<compile_context>
chip_gen: v7x
topology: tpu7x:2x2x1
jax: 0.10.0
libtpu: 0.0.40
codegen_flags: <defaults>
</compile_context>

<pallas_src>
import functools

import jax
import jax.numpy as jnp
from jax.experimental import pallas as pl
from jax.experimental.pallas import tpu as pltpu


NEG_SLOPE = 0.01          # nn.LeakyReLU default negative_slope
BN_EPS = 1e-5             # nn.BatchNorm1d default eps

# Indices into the packed weight/bias stacks.
IDX_IN = 0                # dense1 (+BN1 folded), input features zero-padded to H
IDX_STAGE0 = 1            # linear_stages[0].dense1..4 (+BN folded): rows 1..4
IDX_STAGE1 = 5            # linear_stages[1].dense1..4 (+BN folded): rows 5..8
IDX_W4 = 9                # dense4, output zero-padded to H
IDX_B2 = 10               # bias rows of the fused (dense2 | dense2->dense3+BN3) matmul
IDX_B23 = 11


# --------------------------------------------------------------------------
# Pallas kernel: the whole RefineNet forward (all matmuls + elementwise).
# --------------------------------------------------------------------------
def _refine_kernel(
    x_ref,       # [TB, HG]      bf16 : G batch rows folded into HG = G*H lanes
    w_ref,       # [10, HG, HG]  bf16 : block-diag replicated weights (resident)
    wf_ref,      # [HG, 2*HG]    bf16 : fused [W2 | W2@W3(+BN3)] weight (resident)
    b_ref,       # [12, HG]      f32  : replicated biases (resident)
    out_ref,     # [TB, 2*HG]    f32  : [:, :HG] = p1 (padded), [:, HG:] = p2 (padded)
):
    HG = w_ref.shape[2]

    def leaky(v):
        # max(v, 0.01*v) == LeakyReLU(v) for slope in (0,1); 2 VALU ops, stays f32.
        return jnp.maximum(v, NEG_SLOPE * v)

    def dense(v, idx):
        # bf16 x bf16 -> f32 on the MXU; bias add stays f32.
        return (jnp.dot(v.astype(jnp.bfloat16), w_ref[idx],
                        preferred_element_type=jnp.float32)
                + b_ref[idx:idx + 1, :])

    def stage(v, base):
        # One residual `Linear` block of the reference module (dropout = identity).
        y = leaky(dense(v, base + 0))
        y = leaky(dense(y, base + 1))
        out = v + y
        y = leaky(dense(out, base + 2))
        y = leaky(dense(y, base + 3))
        return out + y

    # dense1 -> BN1 -> LeakyReLU -> (dropout = identity)
    inp = leaky(dense(x_ref[...], IDX_IN))
    s1 = stage(inp, IDX_STAGE0)                      # linear_stages[0]

    # Fused: [p1 | preact of dense3(+BN3)] = s1 @ [W2 | W2@W3] -- one MXU push.
    both = jnp.dot(s1.astype(jnp.bfloat16), wf_ref[...],
                   preferred_element_type=jnp.float32)
    p1_pad = both[:, :HG] + b_ref[IDX_B2:IDX_B2 + 1, :]
    out_ref[:, :HG] = p1_pad.astype(out_ref.dtype)   # early, lane-aligned writeback
    y = leaky(both[:, HG:] + b_ref[IDX_B23:IDX_B23 + 1, :])

    y = s1 + y + inp
    y = stage(y, IDX_STAGE1)                         # linear_stages[1]
    y = inp + y
    p2_pad = dense(y, IDX_W4)                        # dense4
    out_ref[:, HG:] = p2_pad.astype(out_ref.dtype)


# --------------------------------------------------------------------------
# Parameter construction (deterministic, synthetic) + BN folding (glue).
# --------------------------------------------------------------------------
def _fold_bn(w, b, gamma, beta, mean, var):
    """Fold eval-mode BatchNorm1d into the preceding Linear (w laid out [in, out])."""
    scale = gamma / jnp.sqrt(var + BN_EPS)
    shift = beta - mean * scale
    return w * scale[None, :], b * scale + shift


def make_params(key, in_size, out_size, hidden):
    """Deterministic synthetic RefineNet parameters with BN pre-folded (all f32)."""
    def nxt():
        nonlocal key
        key, sub = jax.random.split(key)
        return sub

    def linear(fan_in, fan_out):
        # weight stored as [in, out] (transpose of PyTorch nn.Linear.weight)
        w = jax.random.normal(nxt(), (fan_in, fan_out), jnp.float32) * (fan_in ** -0.5)
        b = jax.random.normal(nxt(), (fan_out,), jnp.float32) * 0.01
        return w, b

    def bn(n):
        gamma = 1.0 + 0.05 * jax.random.normal(nxt(), (n,), jnp.float32)
        beta = 0.05 * jax.random.normal(nxt(), (n,), jnp.float32)
        mean = 0.05 * jax.random.normal(nxt(), (n,), jnp.float32)
        var = jnp.abs(1.0 + 0.05 * jax.random.normal(nxt(), (n,), jnp.float32))
        return gamma, beta, mean, var

    w_in, b_in = _fold_bn(*linear(in_size, hidden), *bn(hidden))   # dense1 + BN1
    ws, bs = [], []
    for _ in range(2):                 # num_stage = 2
        for _ in range(4):             # dense1..dense4 inside `Linear`
            w, b = _fold_bn(*linear(hidden, hidden), *bn(hidden))
            ws.append(w)
            bs.append(b)
    w2, b2 = linear(hidden, out_size)                              # dense2 (no BN)
    w3, b3 = _fold_bn(*linear(out_size, hidden), *bn(hidden))      # dense3 + BN3
    w4, b4 = linear(hidden, out_size)                              # dense4 (no BN)
    return dict(w_in=w_in, b_in=b_in, ws=ws, bs=bs,
                w2=w2, b2=b2, w3=w3, b3=b3, w4=w4, b4=b4)


def fold_weights(params, hidden):
    """dense2->dense3 fold, feature zero-padding to `hidden`, single bf16 cast.
    Returns the UNreplicated per-layer weights, shared by kernel packing and the
    numerics-matched reference."""
    H = hidden
    in_size = params["w_in"].shape[0]
    out_size = params["w2"].shape[1]
    w23 = params["w2"] @ params["w3"]                  # [H, H] exact f32 fold
    b23 = params["b2"] @ params["w3"] + params["b3"]   # [H]
    w_in = jnp.pad(params["w_in"], ((0, H - in_size), (0, 0)))
    w2 = jnp.pad(params["w2"], ((0, 0), (0, H - out_size)))
    w4 = jnp.pad(params["w4"], ((0, 0), (0, H - out_size)))
    b2 = jnp.pad(params["b2"], (0, H - out_size))
    b4 = jnp.pad(params["b4"], (0, H - out_size))
    ws = [w_in] + list(params["ws"]) + [w4]            # 10 x [H, H]
    bs = [params["b_in"]] + list(params["bs"]) + [b4]  # 10 x [H]
    return dict(ws=[w.astype(jnp.bfloat16) for w in ws],
                bs=[b.astype(jnp.float32) for b in bs],
                w2=w2.astype(jnp.bfloat16), w23=w23.astype(jnp.bfloat16),
                b2=b2.astype(jnp.float32), b23=b23.astype(jnp.float32))


def pack_params(folded, group):
    """Exact block-diagonal replication + stacking into the 3 kernel weight operands."""
    G = group

    def rep_w(w):   # [H, H] -> [G*H, G*H] block-diagonal with identical bf16 blocks
        return jnp.kron(jnp.eye(G, dtype=jnp.float32),
                        w.astype(jnp.float32)).astype(jnp.bfloat16)

    def rep_b(b):   # [H] -> [G*H]
        return jnp.tile(b, (G,))

    w_stack = jnp.stack([rep_w(w) for w in folded["ws"]])               # [10, GH, GH]
    w_fused = jnp.concatenate([rep_w(folded["w2"]), rep_w(folded["w23"])],
                              axis=1)                                   # [GH, 2*GH]
    b_stack = jnp.stack([rep_b(b) for b in folded["bs"]]
                        + [rep_b(folded["b2"]), rep_b(folded["b23"])])  # [12, GH]
    return w_stack, w_fused, b_stack


# --------------------------------------------------------------------------
# Wrapper: single pallas_call; batch-row axis is a "parallel" grid dimension.
# --------------------------------------------------------------------------
def _round_up(a, m):
    return ((a + m - 1) // m) * m


@functools.partial(jax.jit,
                   static_argnames=("in_size", "out_size", "hidden", "block_b"))
def refine_net_forward(x, w_stack, w_fused, b_stack, *,
                       in_size, out_size, hidden, block_b=512):
    """x: [B, in_size] f32 -> (p1, p2), each [B, out_size] f32."""
    B = x.shape[0]
    H = hidden
    HG = w_stack.shape[2]
    G = HG // H                                    # batch-folding factor

    # Row tiling of the G-folded layout: ~block_b batch elements per step, but
    # prefer >= 2 grid steps so both v7x TensorCores get work.
    rows_needed = -(-B // G)
    block_rows = max(8, block_b // G)
    half_rows = _round_up(max(-(-rows_needed // 2), 1), 8)
    tb = min(block_rows, half_rows)                # multiple of 8
    rows = _round_up(max(rows_needed, tb), tb)     # padded row count
    b_eff = rows * G                               # padded batch

    # Zero-pad (batch + features), cast once to bf16, fold G batch rows -> lanes.
    x_pad = jnp.pad(x.astype(jnp.bfloat16),
                    ((0, b_eff - B), (0, H - in_size)))
    x2d = x_pad.reshape(rows, HG)

    out = pl.pallas_call(
        _refine_kernel,
        out_shape=jax.ShapeDtypeStruct((rows, 2 * HG), jnp.float32),
        grid=(rows // tb,),
        in_specs=[
            pl.BlockSpec((tb, HG), lambda i: (i, 0)),
            pl.BlockSpec(w_stack.shape, lambda i: (0, 0, 0)),   # resident weights
            pl.BlockSpec(w_fused.shape, lambda i: (0, 0)),      # resident fused weight
            pl.BlockSpec(b_stack.shape, lambda i: (0, 0)),      # resident biases
        ],
        out_specs=pl.BlockSpec((tb, 2 * HG), lambda i: (i, 0)),
        compiler_params=pltpu.CompilerParams(
            dimension_semantics=("parallel",)),
    )(x2d, w_stack, w_fused, b_stack)

    p1 = out[:, :HG].reshape(b_eff, H)[:B, :out_size]
    p2 = out[:, HG:].reshape(b_eff, H)[:B, :out_size]
    return p1, p2


# --------------------------------------------------------------------------
# References for correctness checks.
# --------------------------------------------------------------------------
def refine_net_reference(x, p):
    """Module-faithful pure-f32 eval-mode reference (no bf16, no folds)."""
    def leaky(v):
        return jnp.maximum(v, NEG_SLOPE * v)

    def dense(v, w, b):
        return v @ w + b

    inp = leaky(dense(x, p["w_in"], p["b_in"]))

    def stage(v, base):
        y = leaky(dense(v, p["ws"][base + 0], p["bs"][base + 0]))
        y = leaky(dense(y, p["ws"][base + 1], p["bs"][base + 1]))
        out = v + y
        y = leaky(dense(out, p["ws"][base + 2], p["bs"][base + 2]))
        y = leaky(dense(y, p["ws"][base + 3], p["bs"][base + 3]))
        return out + y

    s1 = stage(inp, 0)
    p1 = dense(s1, p["w2"], p["b2"])
    y = leaky(dense(p1, p["w3"], p["b3"]))
    y = s1 + y + inp
    y = stage(y, 4)
    y = inp + y
    p2 = dense(y, p["w4"], p["b4"])
    return p1, p2


def refine_net_reference_matched(x, folded, in_size, out_size):
    """Pure-JAX reference with the SAME numerics as the kernel (bf16 weights,
    f32 accumulation/elementwise, dense2->dense3 fold) in the unreplicated
    layout — the block-diag replication is exact, so this is a tight check."""
    H = folded["ws"][0].shape[0]
    x_pad = jnp.pad(x.astype(jnp.bfloat16), ((0, 0), (0, H - in_size)))

    def leaky(v):
        return jnp.maximum(v, NEG_SLOPE * v)

    def mm(v, w):
        return jnp.dot(v.astype(jnp.bfloat16), w, preferred_element_type=jnp.float32)

    def dense(v, i):
        return mm(v, folded["ws"][i]) + folded["bs"][i]

    def stage(v, base):
        y = leaky(dense(v, base + 0))
        y = leaky(dense(y, base + 1))
        out = v + y
        y = leaky(dense(out, base + 2))
        y = leaky(dense(y, base + 3))
        return out + y

    inp = leaky(dense(x_pad, IDX_IN))
    s1 = stage(inp, IDX_STAGE0)
    p1 = mm(s1, folded["w2"]) + folded["b2"]
    y = leaky(mm(s1, folded["w23"]) + folded["b23"])
    y = s1 + y + inp
    y = stage(y, IDX_STAGE1)
    y = inp + y
    p2 = dense(y, IDX_W4)
    return p1[:, :out_size], p2[:, :out_size]


if __name__ == "__main__":
    # Small shapes consistent with the module:
    #   cfg.MODEL.NUM_JOINTS = 5, dim = 3 -> input_size = output_size = 12
    #   linear_size (hidden) = 32, num_stage = 2, batch = 8
    NUM_JOINTS, DIM = 5, 3
    IN_SIZE = OUT_SIZE = (NUM_JOINTS - 1) * DIM     # 12
    HIDDEN = 32
    BATCH = 8

    key = jax.random.PRNGKey(0)
    key, kx = jax.random.split(key)
    x = jax.random.normal(kx, (BATCH, IN_SIZE), jnp.float32)
    params = make_params(key, IN_SIZE, OUT_SIZE, HIDDEN)
    folded = fold_weights(params, HIDDEN)

    # Lane/column-filling replication: 256 lanes on v6e/v7x (256x256 MXU),
    # 128 lanes otherwise (v4/v5 generations). G=1 falls back to no folding.
    try:
        kind = jax.devices()[0].device_kind.lower()
    except Exception:
        kind = ""
    lane_target = 256 if ("v6" in kind or "v7" in kind) else 128
    if HIDDEN <= lane_target and lane_target % HIDDEN == 0:
        group = lane_target // HIDDEN
    else:
        group = 1

    w_stack, w_fused, b_stack = pack_params(folded, group)

    p1, p2 = refine_net_forward(x, w_stack, w_fused, b_stack,
                                in_size=IN_SIZE, out_size=OUT_SIZE, hidden=HIDDEN)
    jax.block_until_ready((p1, p2))
    assert p1.shape == (BATCH, OUT_SIZE) and p2.shape == (BATCH, OUT_SIZE)

    # Tight check: kernel vs pure-JAX reference with identical numerics.
    m1, m2 = refine_net_reference_matched(x, folded, IN_SIZE, OUT_SIZE)
    assert jnp.allclose(p1, m1, atol=2e-3, rtol=2e-3), "matched-reference mismatch (p1)"
    assert jnp.allclose(p2, m2, atol=2e-3, rtol=2e-3), "matched-reference mismatch (p2)"

    # Loose sanity check vs the module-faithful f32 reference (bf16 weights and
    # the w2@w3 re-association introduce small, benign rounding drift).
    r1, r2 = refine_net_reference(x, params)
    assert jnp.allclose(p1, r1, atol=0.3, rtol=0.1), "f32-reference drift too large (p1)"
    assert jnp.allclose(p2, r2, atol=0.3, rtol=0.1), "f32-reference drift too large (p2)"

    print("KERNEL_OK")
</pallas_src>

<mosaic_0001>
module attributes {stable_mosaic.version = 11 : i64} {
  func.func @_refine_kernel(%arg0: i32, %arg1: memref<8x128xbf16, #tpu.memory_space<vmem>>, %arg2: memref<10x128x128xbf16, #tpu.memory_space<vmem>>, %arg3: memref<128x256xbf16, #tpu.memory_space<vmem>>, %arg4: memref<12x128xf32, #tpu.memory_space<vmem>>, %arg5: memref<8x256xf32, #tpu.memory_space<vmem>>) attributes {dimension_semantics = [#tpu.dimension_semantics<parallel>], iteration_bounds = array<i64: 1>, scalar_prefetch = 0 : i64, scratch_operands = 0 : i64, tpu.core_type = #tpu.core_type<tc>, window_params = [{transform_indices = @transform_0, window_bounds = array<i64: 8, 128>}, {pipeline_mode = #tpu.pipeline_mode<synchronous>, transform_indices = @transform_1, window_bounds = array<i64: 10, 128, 128>}, {pipeline_mode = #tpu.pipeline_mode<synchronous>, transform_indices = @transform_2, window_bounds = array<i64: 128, 256>}, {pipeline_mode = #tpu.pipeline_mode<synchronous>, transform_indices = @transform_3, window_bounds = array<i64: 12, 128>}, {transform_indices = @transform_4, window_bounds = array<i64: 8, 256>}]} {
    %c0 = arith.constant 0 : index
    %c0_0 = arith.constant 0 : index
    %0 = vector.load %arg1[%c0, %c0_0] : memref<8x128xbf16, #tpu.memory_space<vmem>>, vector<8x128xbf16>
    %c0_1 = arith.constant 0 : index
    %c0_2 = arith.constant 0 : index
    %c0_3 = arith.constant 0 : index
    %1 = vector.load %arg2[%c0_1, %c0_2, %c0_3] : memref<10x128x128xbf16, #tpu.memory_space<vmem>>, vector<1x128x128xbf16>
    %2 = vector.shape_cast %1 : vector<1x128x128xbf16> to vector<128x128xbf16>
    %cst = arith.constant dense<0.000000e+00> : vector<8x128xf32>
    %3 = tpu.matmul %0, %2, %cst {dimension_numbers = #tpu.dot_dimension_numbers<[1], [0], [0], [1], [0, 0, 1, 1], [], []>} : vector<8x128xbf16>, vector<128x128xbf16>, vector<8x128xf32> -> vector<8x128xf32>
    %c0_4 = arith.constant 0 : index
    %c0_5 = arith.constant 0 : index
    %4 = vector.load %arg4[%c0_4, %c0_5] : memref<12x128xf32, #tpu.memory_space<vmem>>, vector<1x128xf32>
    %5 = vector.broadcast %4 : vector<1x128xf32> to vector<8x128xf32>
    %6 = arith.addf %3, %5 : vector<8x128xf32>
    %cst_6 = arith.constant 0.00999999977 : f32
    %7 = vector.broadcast %cst_6 : f32 to vector<8x128xf32>
    %8 = arith.mulf %7, %6 : vector<8x128xf32>
    %9 = arith.maximumf %6, %8 : vector<8x128xf32>
    %10 = arith.truncf %9 : vector<8x128xf32> to vector<8x128xbf16>
    %c1 = arith.constant 1 : index
    %c0_7 = arith.constant 0 : index
    %c0_8 = arith.constant 0 : index
    %11 = vector.load %arg2[%c1, %c0_7, %c0_8] : memref<10x128x128xbf16, #tpu.memory_space<vmem>>, vector<1x128x128xbf16>
    %12 = vector.shape_cast %11 : vector<1x128x128xbf16> to vector<128x128xbf16>
    %cst_9 = arith.constant dense<0.000000e+00> : vector<8x128xf32>
    %13 = tpu.matmul %10, %12, %cst_9 {dimension_numbers = #tpu.dot_dimension_numbers<[1], [0], [0], [1], [0, 0, 1, 1], [], []>} : vector<8x128xbf16>, vector<128x128xbf16>, vector<8x128xf32> -> vector<8x128xf32>
    %c1_10 = arith.constant 1 : index
    %c0_11 = arith.constant 0 : index
    %14 = vector.load %arg4[%c1_10, %c0_11] : memref<12x128xf32, #tpu.memory_space<vmem>>, vector<1x128xf32>
    %15 = vector.broadcast %14 : vector<1x128xf32> to vector<8x128xf32>
    %16 = arith.addf %13, %15 : vector<8x128xf32>
    %cst_12 = arith.constant 0.00999999977 : f32
    %17 = vector.broadcast %cst_12 : f32 to vector<8x128xf32>
    %18 = arith.mulf %17, %16 : vector<8x128xf32>
    %19 = arith.maximumf %16, %18 : vector<8x128xf32>
    %20 = arith.truncf %19 : vector<8x128xf32> to vector<8x128xbf16>
    %c2 = arith.constant 2 : index
    %c0_13 = arith.constant 0 : index
    %c0_14 = arith.constant 0 : index
    %21 = vector.load %arg2[%c2, %c0_13, %c0_14] : memref<10x128x128xbf16, #tpu.memory_space<vmem>>, vector<1x128x128xbf16>
    %22 = vector.shape_cast %21 : vector<1x128x128xbf16> to vector<128x128xbf16>
    %cst_15 = arith.constant dense<0.000000e+00> : vector<8x128xf32>
    %23 = tpu.matmul %20, %22, %cst_15 {dimension_numbers = #tpu.dot_dimension_numbers<[1], [0], [0], [1], [0, 0, 1, 1], [], []>} : vector<8x128xbf16>, vector<128x128xbf16>, vector<8x128xf32> -> vector<8x128xf32>
    %c2_16 = arith.constant 2 : index
    %c0_17 = arith.constant 0 : index
    %24 = vector.load %arg4[%c2_16, %c0_17] : memref<12x128xf32, #tpu.memory_space<vmem>>, vector<1x128xf32>
    %25 = vector.broadcast %24 : vector<1x128xf32> to vector<8x128xf32>
    %26 = arith.addf %23, %25 : vector<8x128xf32>
    %cst_18 = arith.constant 0.00999999977 : f32
    %27 = vector.broadcast %cst_18 : f32 to vector<8x128xf32>
    %28 = arith.mulf %27, %26 : vector<8x128xf32>
    %29 = arith.maximumf %26, %28 : vector<8x128xf32>
    %30 = arith.addf %9, %29 : vector<8x128xf32>
    %31 = arith.truncf %30 : vector<8x128xf32> to vector<8x128xbf16>
    %c3 = arith.constant 3 : index
    %c0_19 = arith.constant 0 : index
    %c0_20 = arith.constant 0 : index
    %32 = vector.load %arg2[%c3, %c0_19, %c0_20] : memref<10x128x128xbf16, #tpu.memory_space<vmem>>, vector<1x128x128xbf16>
    %33 = vector.shape_cast %32 : vector<1x128x128xbf16> to vector<128x128xbf16>
    %cst_21 = arith.constant dense<0.000000e+00> : vector<8x128xf32>
    %34 = tpu.matmul %31, %33, %cst_21 {dimension_numbers = #tpu.dot_dimension_numbers<[1], [0], [0], [1], [0, 0, 1, 1], [], []>} : vector<8x128xbf16>, vector<128x128xbf16>, vector<8x128xf32> -> vector<8x128xf32>
    %c3_22 = arith.constant 3 : index
    %c0_23 = arith.constant 0 : index
    %35 = vector.load %arg4[%c3_22, %c0_23] : memref<12x128xf32, #tpu.memory_space<vmem>>, vector<1x128xf32>
    %36 = vector.broadcast %35 : vector<1x128xf32> to vector<8x128xf32>
    %37 = arith.addf %34, %36 : vector<8x128xf32>
    %cst_24 = arith.constant 0.00999999977 : f32
    %38 = vector.broadcast %cst_24 : f32 to vector<8x128xf32>
    %39 = arith.mulf %38, %37 : vector<8x128xf32>
    %40 = arith.maximumf %37, %39 : vector<8x128xf32>
    %41 = arith.truncf %40 : vector<8x128xf32> to vector<8x128xbf16>
    %c4 = arith.constant 4 : index
    %c0_25 = arith.constant 0 : index
    %c0_26 = arith.constant 0 : index
    %42 = vector.load %arg2[%c4, %c0_25, %c0_26] : memref<10x128x128xbf16, #tpu.memory_space<vmem>>, vector<1x128x128xbf16>
    %43 = vector.shape_cast %42 : vector<1x128x128xbf16> to vector<128x128xbf16>
    %cst_27 = arith.constant dense<0.000000e+00> : vector<8x128xf32>
    %44 = tpu.matmul %41, %43, %cst_27 {dimension_numbers = #tpu.dot_dimension_numbers<[1], [0], [0], [1], [0, 0, 1, 1], [], []>} : vector<8x128xbf16>, vector<128x128xbf16>, vector<8x128xf32> -> vector<8x128xf32>
    %c4_28 = arith.constant 4 : index
    %c0_29 = arith.constant 0 : index
    %45 = vector.load %arg4[%c4_28, %c0_29] : memref<12x128xf32, #tpu.memory_space<vmem>>, vector<1x128xf32>
    %46 = vector.broadcast %45 : vector<1x128xf32> to vector<8x128xf32>
    %47 = arith.addf %44, %46 : vector<8x128xf32>
    %cst_30 = arith.constant 0.00999999977 : f32
    %48 = vector.broadcast %cst_30 : f32 to vector<8x128xf32>
    %49 = arith.mulf %48, %47 : vector<8x128xf32>
    %50 = arith.maximumf %47, %49 : vector<8x128xf32>
    %51 = arith.addf %30, %50 : vector<8x128xf32>
    %52 = arith.truncf %51 : vector<8x128xf32> to vector<8x128xbf16>
    %c0_31 = arith.constant 0 : index
    %c0_32 = arith.constant 0 : index
    %53 = vector.load %arg3[%c0_31, %c0_32] : memref<128x256xbf16, #tpu.memory_space<vmem>>, vector<128x256xbf16>
    %cst_33 = arith.constant dense<0.000000e+00> : vector<8x256xf32>
    %54 = tpu.matmul %52, %53, %cst_33 {dimension_numbers = #tpu.dot_dimension_numbers<[1], [0], [0], [1], [0, 0, 1, 1], [], []>} : vector<8x128xbf16>, vector<128x256xbf16>, vector<8x256xf32> -> vector<8x256xf32>
    %55 = vector.extract_strided_slice %54 {offsets = [0, 0], sizes = [8, 128], strides = [1, 1]} : vector<8x256xf32> to vector<8x128xf32>
    %c10 = arith.constant 10 : index
    %c0_34 = arith.constant 0 : index
    %56 = vector.load %arg4[%c10, %c0_34] : memref<12x128xf32, #tpu.memory_space<vmem>>, vector<1x128xf32>
    %57 = vector.broadcast %56 : vector<1x128xf32> to vector<8x128xf32>
    %58 = arith.addf %55, %57 : vector<8x128xf32>
    %c0_35 = arith.constant 0 : index
    %c0_36 = arith.constant 0 : index
    %59 = vector.load %arg5[%c0_35, %c0_36] : memref<8x256xf32, #tpu.memory_space<vmem>>, vector<8x128xf32>
    tpu.vector_store %arg5[%c0_35, %c0_36], %58 {strides = array<i32>} : memref<8x256xf32, #tpu.memory_space<vmem>>, vector<8x128xf32>,
    %60 = vector.extract_strided_slice %54 {offsets = [0, 128], sizes = [8, 128], strides = [1, 1]} : vector<8x256xf32> to vector<8x128xf32>
    %c11 = arith.constant 11 : index
    %c0_37 = arith.constant 0 : index
    %61 = vector.load %arg4[%c11, %c0_37] : memref<12x128xf32, #tpu.memory_space<vmem>>, vector<1x128xf32>
    %62 = vector.broadcast %61 : vector<1x128xf32> to vector<8x128xf32>
    %63 = arith.addf %60, %62 : vector<8x128xf32>
    %cst_38 = arith.constant 0.00999999977 : f32
    %64 = vector.broadcast %cst_38 : f32 to vector<8x128xf32>
    %65 = arith.mulf %64, %63 : vector<8x128xf32>
    %66 = arith.maximumf %63, %65 : vector<8x128xf32>
    %67 = arith.addf %51, %66 : vector<8x128xf32>
    %68 = arith.addf %67, %9 : vector<8x128xf32>
    %69 = arith.truncf %68 : vector<8x128xf32> to vector<8x128xbf16>
    %c5 = arith.constant 5 : index
    %c0_39 = arith.constant 0 : index
    %c0_40 = arith.constant 0 : index
    %70 = vector.load %arg2[%c5, %c0_39, %c0_40] : memref<10x128x128xbf16, #tpu.memory_space<vmem>>, vector<1x128x128xbf16>
    %71 = vector.shape_cast %70 : vector<1x128x128xbf16> to vector<128x128xbf16>
    %cst_41 = arith.constant dense<0.000000e+00> : vector<8x128xf32>
    %72 = tpu.matmul %69, %71, %cst_41 {dimension_numbers = #tpu.dot_dimension_numbers<[1], [0], [0], [1], [0, 0, 1, 1], [], []>} : vector<8x128xbf16>, vector<128x128xbf16>, vector<8x128xf32> -> vector<8x128xf32>
    %c5_42 = arith.constant 5 : index
    %c0_43 = arith.constant 0 : index
    %73 = vector.load %arg4[%c5_42, %c0_43] : memref<12x128xf32, #tpu.memory_space<vmem>>, vector<1x128xf32>
    %74 = vector.broadcast %73 : vector<1x128xf32> to vector<8x128xf32>
    %75 = arith.addf %72, %74 : vector<8x128xf32>
    %cst_44 = arith.constant 0.00999999977 : f32
    %76 = vector.broadcast %cst_44 : f32 to vector<8x128xf32>
    %77 = arith.mulf %76, %75 : vector<8x128xf32>
    %78 = arith.maximumf %75, %77 : vector<8x128xf32>
    %79 = arith.truncf %78 : vector<8x128xf32> to vector<8x128xbf16>
    %c6 = arith.constant 6 : index
    %c0_45 = arith.constant 0 : index
    %c0_46 = arith.constant 0 : index
    %80 = vector.load %arg2[%c6, %c0_45, %c0_46] : memref<10x128x128xbf16, #tpu.memory_space<vmem>>, vector<1x128x128xbf16>
    %81 = vector.shape_cast %80 : vector<1x128x128xbf16> to vector<128x128xbf16>
    %cst_47 = arith.constant dense<0.000000e+00> : vector<8x128xf32>
    %82 = tpu.matmul %79, %81, %cst_47 {dimension_numbers = #tpu.dot_dimension_numbers<[1], [0], [0], [1], [0, 0, 1, 1], [], []>} : vector<8x128xbf16>, vector<128x128xbf16>, vector<8x128xf32> -> vector<8x128xf32>
    %c6_48 = arith.constant 6 : index
    %c0_49 = arith.constant 0 : index
    %83 = vector.load %arg4[%c6_48, %c0_49] : memref<12x128xf32, #tpu.memory_space<vmem>>, vector<1x128xf32>
    %84 = vector.broadcast %83 : vector<1x128xf32> to vector<8x128xf32>
    %85 = arith.addf %82, %84 : vector<8x128xf32>
    %cst_50 = arith.constant 0.00999999977 : f32
    %86 = vector.broadcast %cst_50 : f32 to vector<8x128xf32>
    %87 = arith.mulf %86, %85 : vector<8x128xf32>
    %88 = arith.maximumf %85, %87 : vector<8x128xf32>
    %89 = arith.addf %68, %88 : vector<8x128xf32>
    %90 = arith.truncf %89 : vector<8x128xf32> to vector<8x128xbf16>
    %c7 = arith.constant 7 : index
    %c0_51 = arith.constant 0 : index
    %c0_52 = arith.constant 0 : index
    %91 = vector.load %arg2[%c7, %c0_51, %c0_52] : memref<10x128x128xbf16, #tpu.memory_space<vmem>>, vector<1x128x128xbf16>
    %92 = vector.shape_cast %91 : vector<1x128x128xbf16> to vector<128x128xbf16>
    %cst_53 = arith.constant dense<0.000000e+00> : vector<8x128xf32>
    %93 = tpu.matmul %90, %92, %cst_53 {dimension_numbers = #tpu.dot_dimension_numbers<[1], [0], [0], [1], [0, 0, 1, 1], [], []>} : vector<8x128xbf16>, vector<128x128xbf16>, vector<8x128xf32> -> vector<8x128xf32>
    %c7_54 = arith.constant 7 : index
    %c0_55 = arith.constant 0 : index
    %94 = vector.load %arg4[%c7_54, %c0_55] : memref<12x128xf32, #tpu.memory_space<vmem>>, vector<1x128xf32>
    %95 = vector.broadcast %94 : vector<1x128xf32> to vector<8x128xf32>
    %96 = arith.addf %93, %95 : vector<8x128xf32>
    %cst_56 = arith.constant 0.00999999977 : f32
    %97 = vector.broadcast %cst_56 : f32 to vector<8x128xf32>
    %98 = arith.mulf %97, %96 : vector<8x128xf32>
    %99 = arith.maximumf %96, %98 : vector<8x128xf32>
    %100 = arith.truncf %99 : vector<8x128xf32> to vector<8x128xbf16>
    %c8 = arith.constant 8 : index
    %c0_57 = arith.constant 0 : index
    %c0_58 = arith.constant 0 : index
    %101 = vector.load %arg2[%c8, %c0_57, %c0_58] : memref<10x128x128xbf16, #tpu.memory_space<vmem>>, vector<1x128x128xbf16>
    %102 = vector.shape_cast %101 : vector<1x128x128xbf16> to vector<128x128xbf16>
    %cst_59 = arith.constant dense<0.000000e+00> : vector<8x128xf32>
    %103 = tpu.matmul %100, %102, %cst_59 {dimension_numbers = #tpu.dot_dimension_numbers<[1], [0], [0], [1], [0, 0, 1, 1], [], []>} : vector<8x128xbf16>, vector<128x128xbf16>, vector<8x128xf32> -> vector<8x128xf32>
    %c8_60 = arith.constant 8 : index
    %c0_61 = arith.constant 0 : index
    %104 = vector.load %arg4[%c8_60, %c0_61] : memref<12x128xf32, #tpu.memory_space<vmem>>, vector<1x128xf32>
    %105 = vector.broadcast %104 : vector<1x128xf32> to vector<8x128xf32>
    %106 = arith.addf %103, %105 : vector<8x128xf32>
    %cst_62 = arith.constant 0.00999999977 : f32
    %107 = vector.broadcast %cst_62 : f32 to vector<8x128xf32>
    %108 = arith.mulf %107, %106 : vector<8x128xf32>
    %109 = arith.maximumf %106, %108 : vector<8x128xf32>
    %110 = arith.addf %89, %109 : vector<8x128xf32>
    %111 = arith.addf %9, %110 : vector<8x128xf32>
    %112 = arith.truncf %111 : vector<8x128xf32> to vector<8x128xbf16>
    %c9 = arith.constant 9 : index
    %c0_63 = arith.constant 0 : index
    %c0_64 = arith.constant 0 : index
    %113 = vector.load %arg2[%c9, %c0_63, %c0_64] : memref<10x128x128xbf16, #tpu.memory_space<vmem>>, vector<1x128x128xbf16>
    %114 = vector.shape_cast %113 : vector<1x128x128xbf16> to vector<128x128xbf16>
    %cst_65 = arith.constant dense<0.000000e+00> : vector<8x128xf32>
    %115 = tpu.matmul %112, %114, %cst_65 {dimension_numbers = #tpu.dot_dimension_numbers<[1], [0], [0], [1], [0, 0, 1, 1], [], []>} : vector<8x128xbf16>, vector<128x128xbf16>, vector<8x128xf32> -> vector<8x128xf32>
    %c9_66 = arith.constant 9 : index
    %c0_67 = arith.constant 0 : index
    %116 = vector.load %arg4[%c9_66, %c0_67] : memref<12x128xf32, #tpu.memory_space<vmem>>, vector<1x128xf32>
    %117 = vector.broadcast %116 : vector<1x128xf32> to vector<8x128xf32>
    %118 = arith.addf %115, %117 : vector<8x128xf32>
    %c0_68 = arith.constant 0 : index
    %c128 = arith.constant 128 : index
    %119 = vector.load %arg5[%c0_68, %c128] : memref<8x256xf32, #tpu.memory_space<vmem>>, vector<8x128xf32>
    tpu.vector_store %arg5[%c0_68, %c128], %118 {strides = array<i32>} : memref<8x256xf32, #tpu.memory_space<vmem>>, vector<8x128xf32>,
    return
  }
  func.func @transform_0(%arg0: i32) -> (i32, i32) {
    %c0_i32 = arith.constant 0 : i32
    %c0_i32_0 = arith.constant 0 : i32
    return %arg0, %c0_i32 : i32, i32
  }
  func.func @transform_1(%arg0: i32) -> (i32, i32, i32) {
    %c0_i32 = arith.constant 0 : i32
    %c0_i32_0 = arith.constant 0 : i32
    %c0_i32_1 = arith.constant 0 : i32
    %c0_i32_2 = arith.constant 0 : i32
    return %c0_i32, %c0_i32_0, %c0_i32_1 : i32, i32, i32
  }
  func.func @transform_2(%arg0: i32) -> (i32, i32) {
    %c0_i32 = arith.constant 0 : i32
    %c0_i32_0 = arith.constant 0 : i32
    %c0_i32_1 = arith.constant 0 : i32
    return %c0_i32, %c0_i32_0 : i32, i32
  }
  func.func @transform_3(%arg0: i32) -> (i32, i32) {
    %c0_i32 = arith.constant 0 : i32
    %c0_i32_0 = arith.constant 0 : i32
    %c0_i32_1 = arith.constant 0 : i32
    return %c0_i32, %c0_i32_0 : i32, i32
  }
  func.func @transform_4(%arg0: i32) -> (i32, i32) {
    %c0_i32 = arith.constant 0 : i32
    %c0_i32_0 = arith.constant 0 : i32
    return %arg0, %c0_i32 : i32, i32
  }
}

</mosaic_0001>

<llo_original>
// kernel: refine_net_forward.1
$region0: #{refine_net_forward.1}
  #allocation0 [shape = 'u32[]', space=smem, size = 0x4, offset = 0x4, fixed_abs, tag = 'smem constant byte address 0x4 - core index']
  #allocation1 [shape = 'u32[144,128]{1,0:T(1,128)}', space=vmem, size = 0x12000, scoped, tag = 'internal scratch']
  %s0 = inlined_call_operand.vmem [shape: bf16[8,128], index: 0, kind: input, shape index: {}]
  %s1 = inlined_call_operand.hbm [shape: bf16[10,128,128], index: 1, kind: input, shape index: {}]
  %s2 = inlined_call_operand.hbm [shape: bf16[128,256], index: 2, kind: input, shape index: {}]
  %s3 = inlined_call_operand.vmem [shape: f32[12,128], index: 3, kind: input, shape index: {}]
  %s4 = inlined_call_operand.vmem [shape: f32[8,256], index: 4, kind: output, shape index: {}]
  %s5 = sld [smem:[#allocation0]]
  $region34: #{refine_net_forward.1} parent=0
    _
  %s7 = ssub.s32 1, %s5
  %s8 = scalar_select 0, %s7, %s5
  $region1: #{refine_net_forward.1} parent=0
    #allocation2 [shape = 'u8[327680]{0}', space=vmem, size = 0x50000, scoped, tag = 'input window, operand 1, single buffered']
    #allocation3 [shape = 's32[1]{0}', space=sflag, size = 0x4, scoped, tag = 'scoped memory for refine_net_forward.1']
    #allocation4 [shape = 'u8[65536]{0}', space=vmem, size = 0x10000, scoped, tag = 'input window, operand 2, single buffered']
    #allocation5 [shape = 's32[1]{0}', space=sflag, size = 0x4, scoped, tag = 'scoped memory for refine_net_forward.1']
    %9 = vsyncpa [#allocation3], 0
    %10 = vsyncpa [#allocation5], 0
    // Predicated region
    $region2: #{refine_net_forward.1} parent=1 // pred_check
      _
    $region3: #{refine_net_forward.1} parent=1 // pred_check_branch
      %12 = sbr.rel (0) target = $region5
    $region4: #{refine_net_forward.1} parent=1 // pred_region
      _
    $region5: #{refine_net_forward.1} parent=1 // pred_fallthru
      _
    // Predicated region
    $region6: #{refine_net_forward.1} parent=1 // pred_check
      _
    $region7: #{refine_net_forward.1} parent=1 // pred_check_branch
      %14 = sbr.rel (0) target = $region9
    $region8: #{refine_net_forward.1} parent=1 // pred_region
      %s16 = ssub.s32 10240, 10240
      %17 = vsyncadd [#allocation3], %s16
      %s18 = sshll.u32 [#allocation2], 4
      %s19 = int_to_ptr.vmem [resolvable:$true] %s18
      %24 = dma.hbm_to_vmem [thread:$0]  %s1, 10240, %s19, [#allocation3], 64, 64, 4
    $region9: #{refine_net_forward.1} parent=1 // pred_fallthru
      _
    // Predicated region
    $region10: #{refine_net_forward.1} parent=1 // pred_check
      _
    $region11: #{refine_net_forward.1} parent=1 // pred_check_branch
      %26 = sbr.rel (0) target = $region13
    $region12: #{refine_net_forward.1} parent=1 // pred_region
      %s28 = ssub.s32 2048, 2048
      %29 = vsyncadd [#allocation5], %s28
      %s30 = sshll.u32 [#allocation4], 4
      %s31 = int_to_ptr.vmem [resolvable:$true] %s30
      %36 = dma.hbm_to_vmem [thread:$0]  %s2, 2048, %s31, [#allocation5], 128, 128, 8
    $region13: #{refine_net_forward.1} parent=1 // pred_fallthru
      _
    // Predicated region
    $region14: #{refine_net_forward.1} parent=1 // pred_check
      _
    $region15: #{refine_net_forward.1} parent=1 // pred_check_branch
      %38 = sbr.rel (0) target = $region17
    $region16: #{refine_net_forward.1} parent=1 // pred_region
      _
    $region17: #{refine_net_forward.1} parent=1 // pred_fallthru
      _
    // Predicated region
    $region18: #{refine_net_forward.1} parent=1 // pred_check
      _
    $region19: #{refine_net_forward.1} parent=1 // pred_check_branch
      %40 = sbr.rel (0) target = $region21
    $region20: #{refine_net_forward.1} parent=1 // pred_region
      %41 = dma.done [#allocation3], 10240
    $region21: #{refine_net_forward.1} parent=1 // pred_fallthru
      _
    // Predicated region
    $region22: #{refine_net_forward.1} parent=1 // pred_check
      _
    $region23: #{refine_net_forward.1} parent=1 // pred_check_branch
      %43 = sbr.rel (0) target = $region25
    $region24: #{refine_net_forward.1} parent=1 // pred_region
      %44 = dma.done [#allocation5], 2048
    $region25: #{refine_net_forward.1} parent=1 // pred_fallthru
      _
    %v46 = vld [vmem:[%s0] sm:$0xf]
    %v47 = vld [vmem:[#allocation2] sm:$0xf]
    %v48 = vld [vmem:[#allocation2 + $0x4] sm:$0xf]
    %v49 = vld [vmem:[#allocation2 + $0x8] sm:$0xf]
    %v50 = vld [vmem:[#allocation2 + $0xc] sm:$0xf]
    %v51 = vld [vmem:[#allocation2 + $0x10] sm:$0xf]
    %v52 = vld [vmem:[#allocation2 + $0x14] sm:$0xf]
    %v53 = vld [vmem:[#allocation2 + $0x18] sm:$0xf]
    %v54 = vld [vmem:[#allocation2 + $0x1c] sm:$0xf]
    %v55 = vld [vmem:[#allocation2 + $0x20] sm:$0xf]
    %v56 = vld [vmem:[#allocation2 + $0x24] sm:$0xf]
    %v57 = vld [vmem:[#allocation2 + $0x28] sm:$0xf]
    %v58 = vld [vmem:[#allocation2 + $0x2c] sm:$0xf]
    %v59 = vld [vmem:[#allocation2 + $0x30] sm:$0xf]
    %v60 = vld [vmem:[#allocation2 + $0x34] sm:$0xf]
    %v61 = vld [vmem:[#allocation2 + $0x38] sm:$0xf]
    %v62 = vld [vmem:[#allocation2 + $0x3c] sm:$0xf]
    %v63 = vld [vmem:[%s3] sm:$0x1]
    %v64 = vlaneseq
    %v65 = vshrl.u32 %v64, 7
    %v66 = vsub.s32 0, %v65
    %v67 = vrot.slane %v63, %v66
    %v84 = vunpack.c.l.b16 %v47
    %v85 = vunpack.c.l.b16 %v48
    %v86 = vunpack.c.l.b16 %v49
    %v87 = vunpack.c.l.b16 %v50
    %v88 = vunpack.c.l.b16 %v51
    %v89 = vunpack.c.l.b16 %v52
    %v90 = vunpack.c.l.b16 %v53
    %v91 = vunpack.c.l.b16 %v54
    %v92 = vunpack.c.l.b16 %v55
    %v93 = vunpack.c.l.b16 %v56
    %v94 = vunpack.c.l.b16 %v57
    %v95 = vunpack.c.l.b16 %v58
    %v96 = vunpack.c.l.b16 %v59
    %v97 = vunpack.c.l.b16 %v60
    %v98 = vunpack.c.l.b16 %v61
    %v99 = vunpack.c.l.b16 %v62
    %v100 = vpack.c.b16 %v85, %v84
    %v101 = vpack.c.b16 %v87, %v86
    %v102 = vpack.c.b16 %v89, %v88
    %v103 = vpack.c.b16 %v91, %v90
    %v104 = vpack.c.b16 %v93, %v92
    %v105 = vpack.c.b16 %v95, %v94
    %v106 = vpack.c.b16 %v97, %v96
    %v107 = vpack.c.b16 %v99, %v98
    %116 = vmatprep.subr.bf16.mxu0 0
    %117 = vmatpush1.bf16.msra.mxu0 %v100
    %118 = vmatprep.subr.bf16.mxu0 0
    %119 = vmatpush1.bf16.msra.mxu0 %v101
    %120 = vmatprep.subr.bf16.mxu0 0
    %121 = vmatpush1.bf16.msra.mxu0 %v102
    %122 = vmatprep.subr.bf16.mxu0 0
    %123 = vmatpush1.bf16.msra.mxu0 %v103
    %124 = vmatprep.subr.bf16.mxu0 0
    %125 = vmatpush1.bf16.msra.mxu0 %v104
    %126 = vmatprep.subr.bf16.mxu0 0
    %127 = vmatpush1.bf16.msra.mxu0 %v105
    %128 = vmatprep.subr.bf16.mxu0 0
    %129 = vmatpush1.bf16.msra.mxu0 %v106
    %130 = vmatprep.subr.bf16.mxu0 0
    %131 = vmatpush1.bf16.msra.mxu0 %v107
    %132 = vmatprep.subr.bf16.mxu0 0
    %133 = vmatpush1.bf16.msra.mxu0 0
    %134 = vmatprep.subr.bf16.mxu0 0
    %135 = vmatpush1.bf16.msra.mxu0 0
    %136 = vmatprep.subr.bf16.mxu0 0
    %137 = vmatpush1.bf16.msra.mxu0 0
    %138 = vmatprep.subr.bf16.mxu0 0
    %139 = vmatpush1.bf16.msra.mxu0 0
    %140 = vmatprep.subr.bf16.mxu0 0
    %141 = vmatpush1.bf16.msra.mxu0 0
    %142 = vmatprep.subr.bf16.mxu0 0
    %143 = vmatpush1.bf16.msra.mxu0 0
    %144 = vmatprep.subr.bf16.mxu0 0
    %145 = vmatpush1.bf16.msra.mxu0 0
    %146 = vmatprep.subr.bf16.mxu0 0
    %147 = vmatpush1.bf16.msra.mxu0 0
    %148 = vmatprep.mubr.bf16.mxu0 0
    %149 = vmatmul.mubr.bf16.gmra.mrb[0].mxu0 %v46
    %v150 = vpop.f32.mrb[0].mxu0
    %v151 = vadd.f32 %v67, %v150
    %v152 = vpop.f32.mrb[0].mxu0
    %v153 = vpop.f32.mrb[0].mxu0
    %v154 = vpop.f32.mrb[0].mxu0
    %155 = vdwg.mxu0
    %v156 = vmul.f32 %v151, 0.01
    %v157 = vmax.f32 %v151, %v156
    %v158 = vpack.c.bf16 %v157, %v157
    %s159 = scalar_lea.vmem [#allocation2], 64
    %v160 = vld [vmem:[%s159] sm:$0xf]
    %v161 = vld [vmem:[%s159 + $0x4] sm:$0xf]
    %v162 = vld [vmem:[%s159 + $0x8] sm:$0xf]
    %v163 = vld [vmem:[%s159 + $0xc] sm:$0xf]
    %v164 = vld [vmem:[%s159 + $0x10] sm:$0xf]
    %v165 = vld [vmem:[%s159 + $0x14] sm:$0xf]
    %v166 = vld [vmem:[%s159 + $0x18] sm:$0xf]
    %v167 = vld [vmem:[%s159 + $0x1c] sm:$0xf]
    %v168 = vld [vmem:[%s159 + $0x20] sm:$0xf]
    %v169 = vld [vmem:[%s159 + $0x24] sm:$0xf]
    %v170 = vld [vmem:[%s159 + $0x28] sm:$0xf]
    %v171 = vld [vmem:[%s159 + $0x2c] sm:$0xf]
    %v172 = vld [vmem:[%s159 + $0x30] sm:$0xf]
    %v173 = vld [vmem:[%s159 + $0x34] sm:$0xf]
    %v174 = vld [vmem:[%s159 + $0x38] sm:$0xf]
    %v175 = vld [vmem:[%s159 + $0x3c] sm:$0xf]
    %v176 = vld [vmem:[%s3 + $0x1] sm:$0x1]
    %v177 = vlaneseq
    %v178 = vshrl.u32 %v177, 7
    %v179 = vsub.s32 0, %v178
    %v180 = vrot.slane %v176, %v179
    %v197 = vunpack.c.l.b16 %v160
    %v198 = vunpack.c.l.b16 %v161
    %v199 = vunpack.c.l.b16 %v162
    %v200 = vunpack.c.l.b16 %v163
    %v201 = vunpack.c.l.b16 %v164
    %v202 = vunpack.c.l.b16 %v165
    %v203 = vunpack.c.l.b16 %v166
    %v204 = vunpack.c.l.b16 %v167
    %v205 = vunpack.c.l.b16 %v168
    %v206 = vunpack.c.l.b16 %v169
    %v207 = vunpack.c.l.b16 %v170
    %v208 = vunpack.c.l.b16 %v171
    %v209 = vunpack.c.l.b16 %v172
    %v210 = vunpack.c.l.b16 %v173
    %v211 = vunpack.c.l.b16 %v174
    %v212 = vunpack.c.l.b16 %v175
    %v213 = vpack.c.b16 %v198, %v197
    %v214 = vpack.c.b16 %v200, %v199
    %v215 = vpack.c.b16 %v202, %v201
    %v216 = vpack.c.b16 %v204, %v203
    %v217 = vpack.c.b16 %v206, %v205
    %v218 = vpack.c.b16 %v208, %v207
    %v219 = vpack.c.b16 %v210, %v209
    %v220 = vpack.c.b16 %v212, %v211
    %229 = vmatprep.subr.bf16.mxu0 0
    %230 = vmatpush1.bf16.msra.mxu0 %v213
    %231 = vmatprep.subr.bf16.mxu0 0
    %232 = vmatpush1.bf16.msra.mxu0 %v214
    %233 = vmatprep.subr.bf16.mxu0 0
    %234 = vmatpush1.bf16.msra.mxu0 %v215
    %235 = vmatprep.subr.bf16.mxu0 0
    %236 = vmatpush1.bf16.msra.mxu0 %v216
    %237 = vmatprep.subr.bf16.mxu0 0
    %238 = vmatpush1.bf16.msra.mxu0 %v217
    %239 = vmatprep.subr.bf16.mxu0 0
    %240 = vmatpush1.bf16.msra.mxu0 %v218
    %241 = vmatprep.subr.bf16.mxu0 0
    %242 = vmatpush1.bf16.msra.mxu0 %v219
    %243 = vmatprep.subr.bf16.mxu0 0
    %244 = vmatpush1.bf16.msra.mxu0 %v220
    %245 = vmatprep.subr.bf16.mxu0 0
    %246 = vmatpush1.bf16.msra.mxu0 0
    %247 = vmatprep.subr.bf16.mxu0 0
    %248 = vmatpush1.bf16.msra.mxu0 0
    %249 = vmatprep.subr.bf16.mxu0 0
    %250 = vmatpush1.bf16.msra.mxu0 0
    %251 = vmatprep.subr.bf16.mxu0 0
    %252 = vmatpush1.bf16.msra.mxu0 0
    %253 = vmatprep.subr.bf16.mxu0 0
    %254 = vmatpush1.bf16.msra.mxu0 0
    %255 = vmatprep.subr.bf16.mxu0 0
    %256 = vmatpush1.bf16.msra.mxu0 0
    %257 = vmatprep.subr.bf16.mxu0 0
    %258 = vmatpush1.bf16.msra.mxu0 0
    %259 = vmatprep.subr.bf16.mxu0 0
    %260 = vmatpush1.bf16.msra.mxu0 0
    %261 = vmatprep.mubr.bf16.mxu0 0
    %262 = vmatmul.mubr.bf16.gmra.mrb[0].mxu0 %v158
    %v263 = vpop.f32.mrb[0].mxu0
    %v264 = vadd.f32 %v180, %v263
    %v265 = vpop.f32.mrb[0].mxu0
    %v266 = vpop.f32.mrb[0].mxu0
    %v267 = vpop.f32.mrb[0].mxu0
    %268 = vdwg.mxu0
    %v269 = vmul.f32 %v264, 0.01
    %v270 = vmax.f32 %v264, %v269
    %v271 = vpack.c.bf16 %v270, %v270
    %s272 = scalar_lea.vmem [#allocation2], 128
    %v273 = vld [vmem:[%s272] sm:$0xf]
    %v274 = vld [vmem:[%s272 + $0x4] sm:$0xf]
    %v275 = vld [vmem:[%s272 + $0x8] sm:$0xf]
    %v276 = vld [vmem:[%s272 + $0xc] sm:$0xf]
    %v277 = vld [vmem:[%s272 + $0x10] sm:$0xf]
    %v278 = vld [vmem:[%s272 + $0x14] sm:$0xf]
    %v279 = vld [vmem:[%s272 + $0x18] sm:$0xf]
    %v280 = vld [vmem:[%s272 + $0x1c] sm:$0xf]
    %v281 = vld [vmem:[%s272 + $0x20] sm:$0xf]
    %v282 = vld [vmem:[%s272 + $0x24] sm:$0xf]
    %v283 = vld [vmem:[%s272 + $0x28] sm:$0xf]
    %v284 = vld [vmem:[%s272 + $0x2c] sm:$0xf]
    %v285 = vld [vmem:[%s272 + $0x30] sm:$0xf]
    %v286 = vld [vmem:[%s272 + $0x34] sm:$0xf]
    %v287 = vld [vmem:[%s272 + $0x38] sm:$0xf]
    %v288 = vld [vmem:[%s272 + $0x3c] sm:$0xf]
    %v289 = vld [vmem:[%s3 + $0x2] sm:$0x1]
    %v290 = vlaneseq
    %v291 = vshrl.u32 %v290, 7
    %v292 = vsub.s32 0, %v291
    %v293 = vrot.slane %v289, %v292
    %v310 = vunpack.c.l.b16 %v273
    %v311 = vunpack.c.l.b16 %v274
    %v312 = vunpack.c.l.b16 %v275
    %v313 = vunpack.c.l.b16 %v276
    %v314 = vunpack.c.l.b16 %v277
    %v315 = vunpack.c.l.b16 %v278
    %v316 = vunpack.c.l.b16 %v279
    %v317 = vunpack.c.l.b16 %v280
    %v318 = vunpack.c.l.b16 %v281
    %v319 = vunpack.c.l.b16 %v282
    %v320 = vunpack.c.l.b16 %v283
    %v321 = vunpack.c.l.b16 %v284
    %v322 = vunpack.c.l.b16 %v285
    %v323 = vunpack.c.l.b16 %v286
    %v324 = vunpack.c.l.b16 %v287
    %v325 = vunpack.c.l.b16 %v288
    %v326 = vpack.c.b16 %v311, %v310
    %v327 = vpack.c.b16 %v313, %v312
    %v328 = vpack.c.b16 %v315, %v314
    %v329 = vpack.c.b16 %v317, %v316
    %v330 = vpack.c.b16 %v319, %v318
    %v331 = vpack.c.b16 %v321, %v320
    %v332 = vpack.c.b16 %v323, %v322
    %v333 = vpack.c.b16 %v325, %v324
    %342 = vmatprep.subr.bf16.mxu0 0
    %343 = vmatpush1.bf16.msra.mxu0 %v326
    %344 = vmatprep.subr.bf16.mxu0 0
    %345 = vmatpush1.bf16.msra.mxu0 %v327
    %346 = vmatprep.subr.bf16.mxu0 0
    %347 = vmatpush1.bf16.msra.mxu0 %v328
    %348 = vmatprep.subr.bf16.mxu0 0
    %349 = vmatpush1.bf16.msra.mxu0 %v329
    %350 = vmatprep.subr.bf16.mxu0 0
    %351 = vmatpush1.bf16.msra.mxu0 %v330
    %352 = vmatprep.subr.bf16.mxu0 0
    %353 = vmatpush1.bf16.msra.mxu0 %v331
    %354 = vmatprep.subr.bf16.mxu0 0
    %355 = vmatpush1.bf16.msra.mxu0 %v332
    %356 = vmatprep.subr.bf16.mxu0 0
    %357 = vmatpush1.bf16.msra.mxu0 %v333
    %358 = vmatprep.subr.bf16.mxu0 0
    %359 = vmatpush1.bf16.msra.mxu0 0
    %360 = vmatprep.subr.bf16.mxu0 0
    %361 = vmatpush1.bf16.msra.mxu0 0
    %362 = vmatprep.subr.bf16.mxu0 0
    %363 = vmatpush1.bf16.msra.mxu0 0
    %364 = vmatprep.subr.bf16.mxu0 0
    %365 = vmatpush1.bf16.msra.mxu0 0
    %366 = vmatprep.subr.bf16.mxu0 0
    %367 = vmatpush1.bf16.msra.mxu0 0
    %368 = vmatprep.subr.bf16.mxu0 0
    %369 = vmatpush1.bf16.msra.mxu0 0
    %370 = vmatprep.subr.bf16.mxu0 0
    %371 = vmatpush1.bf16.msra.mxu0 0
    %372 = vmatprep.subr.bf16.mxu0 0
    %373 = vmatpush1.bf16.msra.mxu0 0
    %374 = vmatprep.mubr.bf16.mxu0 0
    %375 = vmatmul.mubr.bf16.gmra.mrb[0].mxu0 %v271
    %v376 = vpop.f32.mrb[0].mxu0
    %v377 = vadd.f32 %v293, %v376
    %v378 = vpop.f32.mrb[0].mxu0
    %v379 = vpop.f32.mrb[0].mxu0
    %v380 = vpop.f32.mrb[0].mxu0
    %381 = vdwg.mxu0
    %v382 = vmul.f32 %v377, 0.01
    %v383 = vmax.f32 %v377, %v382
    %v384 = vadd.f32 %v157, %v383
    %v385 = vpack.c.bf16 %v384, %v384
    %s386 = scalar_lea.vmem [#allocation2], 192
    %v387 = vld [vmem:[%s386] sm:$0xf]
    %v388 = vld [vmem:[%s386 + $0x4] sm:$0xf]
    %v389 = vld [vmem:[%s386 + $0x8] sm:$0xf]
    %v390 = vld [vmem:[%s386 + $0xc] sm:$0xf]
    %v391 = vld [vmem:[%s386 + $0x10] sm:$0xf]
    %v392 = vld [vmem:[%s386 + $0x14] sm:$0xf]
    %v393 = vld [vmem:[%s386 + $0x18] sm:$0xf]
    %v394 = vld [vmem:[%s386 + $0x1c] sm:$0xf]
    %v395 = vld [vmem:[%s386 + $0x20] sm:$0xf]
    %v396 = vld [vmem:[%s386 + $0x24] sm:$0xf]
    %v397 = vld [vmem:[%s386 + $0x28] sm:$0xf]
    %v398 = vld [vmem:[%s386 + $0x2c] sm:$0xf]
    %v399 = vld [vmem:[%s386 + $0x30] sm:$0xf]
    %v400 = vld [vmem:[%s386 + $0x34] sm:$0xf]
    %v401 = vld [vmem:[%s386 + $0x38] sm:$0xf]
    %v402 = vld [vmem:[%s386 + $0x3c] sm:$0xf]
    %v403 = vld [vmem:[%s3 + $0x3] sm:$0x1]
    %v404 = vlaneseq
    %v405 = vshrl.u32 %v404, 7
    %v406 = vsub.s32 0, %v405
    %v407 = vrot.slane %v403, %v406
    %v424 = vunpack.c.l.b16 %v387
    %v425 = vunpack.c.l.b16 %v388
    %v426 = vunpack.c.l.b16 %v389
    %v427 = vunpack.c.l.b16 %v390
    %v428 = vunpack.c.l.b16 %v391
    %v429 = vunpack.c.l.b16 %v392
    %v430 = vunpack.c.l.b16 %v393
    %v431 = vunpack.c.l.b16 %v394
    %v432 = vunpack.c.l.b16 %v395
    %v433 = vunpack.c.l.b16 %v396
    %v434 = vunpack.c.l.b16 %v397
    %v435 = vunpack.c.l.b16 %v398
    %v436 = vunpack.c.l.b16 %v399
    %v437 = vunpack.c.l.b16 %v400
    %v438 = vunpack.c.l.b16 %v401
    %v439 = vunpack.c.l.b16 %v402
    %v440 = vpack.c.b16 %v425, %v424
    %v441 = vpack.c.b16 %v427, %v426
    %v442 = vpack.c.b16 %v429, %v428
    %v443 = vpack.c.b16 %v431, %v430
    %v444 = vpack.c.b16 %v433, %v432
    %v445 = vpack.c.b16 %v435, %v434
    %v446 = vpack.c.b16 %v437, %v436
    %v447 = vpack.c.b16 %v439, %v438
    %456 = vmatprep.subr.bf16.mxu0 0
    %457 = vmatpush1.bf16.msra.mxu0 %v440
    %458 = vmatprep.subr.bf16.mxu0 0
    %459 = vmatpush1.bf16.msra.mxu0 %v441
    %460 = vmatprep.subr.bf16.mxu0 0
    %461 = vmatpush1.bf16.msra.mxu0 %v442
    %462 = vmatprep.subr.bf16.mxu0 0
    %463 = vmatpush1.bf16.msra.mxu0 %v443
    %464 = vmatprep.subr.bf16.mxu0 0
    %465 = vmatpush1.bf16.msra.mxu0 %v444
    %466 = vmatprep.subr.bf16.mxu0 0
    %467 = vmatpush1.bf16.msra.mxu0 %v445
    %468 = vmatprep.subr.bf16.mxu0 0
    %469 = vmatpush1.bf16.msra.mxu0 %v446
    %470 = vmatprep.subr.bf16.mxu0 0
    %471 = vmatpush1.bf16.msra.mxu0 %v447
    %472 = vmatprep.subr.bf16.mxu0 0
    %473 = vmatpush1.bf16.msra.mxu0 0
    %474 = vmatprep.subr.bf16.mxu0 0
    %475 = vmatpush1.bf16.msra.mxu0 0
    %476 = vmatprep.subr.bf16.mxu0 0
    %477 = vmatpush1.bf16.msra.mxu0 0
    %478 = vmatprep.subr.bf16.mxu0 0
    %479 = vmatpush1.bf16.msra.mxu0 0
    %480 = vmatprep.subr.bf16.mxu0 0
    %481 = vmatpush1.bf16.msra.mxu0 0
    %482 = vmatprep.subr.bf16.mxu0 0
    %483 = vmatpush1.bf16.msra.mxu0 0
    %484 = vmatprep.subr.bf16.mxu0 0
    %485 = vmatpush1.bf16.msra.mxu0 0
    %486 = vmatprep.subr.bf16.mxu0 0
    %487 = vmatpush1.bf16.msra.mxu0 0
    %488 = vmatprep.mubr.bf16.mxu0 0
    %489 = vmatmul.mubr.bf16.gmra.mrb[0].mxu0 %v385
    %v490 = vpop.f32.mrb[0].mxu0
    %v491 = vadd.f32 %v407, %v490
    %v492 = vpop.f32.mrb[0].mxu0
    %v493 = vpop.f32.mrb[0].mxu0
    %v494 = vpop.f32.mrb[0].mxu0
    %495 = vdwg.mxu0
    %v496 = vmul.f32 %v491, 0.01
    %v497 = vmax.f32 %v491, %v496
    %v498 = vpack.c.bf16 %v497, %v497
    %s499 = scalar_lea.vmem [#allocation2], 256
    %v500 = vld [vmem:[%s499] sm:$0xf]
    %v501 = vld [vmem:[%s499 + $0x4] sm:$0xf]
    %v502 = vld [vmem:[%s499 + $0x8] sm:$0xf]
    %v503 = vld [vmem:[%s499 + $0xc] sm:$0xf]
    %v504 = vld [vmem:[%s499 + $0x10] sm:$0xf]
    %v505 = vld [vmem:[%s499 + $0x14] sm:$0xf]
    %v506 = vld [vmem:[%s499 + $0x18] sm:$0xf]
    %v507 = vld [vmem:[%s499 + $0x1c] sm:$0xf]
    %v508 = vld [vmem:[%s499 + $0x20] sm:$0xf]
    %v509 = vld [vmem:[%s499 + $0x24] sm:$0xf]
    %v510 = vld [vmem:[%s499 + $0x28] sm:$0xf]
    %v511 = vld [vmem:[%s499 + $0x2c] sm:$0xf]
    %v512 = vld [vmem:[%s499 + $0x30] sm:$0xf]
    %v513 = vld [vmem:[%s499 + $0x34] sm:$0xf]
    %v514 = vld [vmem:[%s499 + $0x38] sm:$0xf]
    %v515 = vld [vmem:[%s499 + $0x3c] sm:$0xf]
    %v516 = vld [vmem:[%s3 + $0x4] sm:$0x1]
    %v517 = vlaneseq
    %v518 = vshrl.u32 %v517, 7
    %v519 = vsub.s32 0, %v518
    %v520 = vrot.slane %v516, %v519
    %v537 = vunpack.c.l.b16 %v500
    %v538 = vunpack.c.l.b16 %v501
    %v539 = vunpack.c.l.b16 %v502
    %v540 = vunpack.c.l.b16 %v503
    %v541 = vunpack.c.l.b16 %v504
    %v542 = vunpack.c.l.b16 %v505
    %v543 = vunpack.c.l.b16 %v506
    %v544 = vunpack.c.l.b16 %v507
    %v545 = vunpack.c.l.b16 %v508
    %v546 = vunpack.c.l.b16 %v509
    %v547 = vunpack.c.l.b16 %v510
    %v548 = vunpack.c.l.b16 %v511
    %v549 = vunpack.c.l.b16 %v512
    %v550 = vunpack.c.l.b16 %v513
    %v551 = vunpack.c.l.b16 %v514
    %v552 = vunpack.c.l.b16 %v515
    %v553 = vpack.c.b16 %v538, %v537
    %v554 = vpack.c.b16 %v540, %v539
    %v555 = vpack.c.b16 %v542, %v541
    %v556 = vpack.c.b16 %v544, %v543
    %v557 = vpack.c.b16 %v546, %v545
    %v558 = vpack.c.b16 %v548, %v547
    %v559 = vpack.c.b16 %v550, %v549
    %v560 = vpack.c.b16 %v552, %v551
    %569 = vmatprep.subr.bf16.mxu0 0
    %570 = vmatpush1.bf16.msra.mxu0 %v553
    %571 = vmatprep.subr.bf16.mxu0 0
    %572 = vmatpush1.bf16.msra.mxu0 %v554
    %573 = vmatprep.subr.bf16.mxu0 0
    %574 = vmatpush1.bf16.msra.mxu0 %v555
    %575 = vmatprep.subr.bf16.mxu0 0
    %576 = vmatpush1.bf16.msra.mxu0 %v556
    %577 = vmatprep.subr.bf16.mxu0 0
    %578 = vmatpush1.bf16.msra.mxu0 %v557
    %579 = vmatprep.subr.bf16.mxu0 0
    %580 = vmatpush1.bf16.msra.mxu0 %v558
    %581 = vmatprep.subr.bf16.mxu0 0
    %582 = vmatpush1.bf16.msra.mxu0 %v559
    %583 = vmatprep.subr.bf16.mxu0 0
    %584 = vmatpush1.bf16.msra.mxu0 %v560
    %585 = vmatprep.subr.bf16.mxu0 0
    %586 = vmatpush1.bf16.msra.mxu0 0
    %587 = vmatprep.subr.bf16.mxu0 0
    %588 = vmatpush1.bf16.msra.mxu0 0
    %589 = vmatprep.subr.bf16.mxu0 0
    %590 = vmatpush1.bf16.msra.mxu0 0
    %591 = vmatprep.subr.bf16.mxu0 0
    %592 = vmatpush1.bf16.msra.mxu0 0
    %593 = vmatprep.subr.bf16.mxu0 0
    %594 = vmatpush1.bf16.msra.mxu0 0
    %595 = vmatprep.subr.bf16.mxu0 0
    %596 = vmatpush1.bf16.msra.mxu0 0
    %597 = vmatprep.subr.bf16.mxu0 0
    %598 = vmatpush1.bf16.msra.mxu0 0
    %599 = vmatprep.subr.bf16.mxu0 0
    %600 = vmatpush1.bf16.msra.mxu0 0
    %601 = vmatprep.mubr.bf16.mxu0 0
    %602 = vmatmul.mubr.bf16.gmra.mrb[0].mxu0 %v498
    %v603 = vpop.f32.mrb[0].mxu0
    %v604 = vadd.f32 %v520, %v603
    %v605 = vpop.f32.mrb[0].mxu0
    %v606 = vpop.f32.mrb[0].mxu0
    %v607 = vpop.f32.mrb[0].mxu0
    %608 = vdwg.mxu0
    %v609 = vmul.f32 %v604, 0.01
    %v610 = vmax.f32 %v604, %v609
    %v611 = vadd.f32 %v384, %v610
    %v612 = vpack.c.bf16 %v611, %v611
    %v613 = vld [vmem:[#allocation4] sm:$0xff]
    %v614 = vld [vmem:[#allocation4 + $0x8] sm:$0xff]
    %v615 = vld [vmem:[#allocation4 + $0x10] sm:$0xff]
    %v616 = vld [vmem:[#allocation4 + $0x18] sm:$0xff]
    %v617 = vld [vmem:[#allocation4 + $0x20] sm:$0xff]
    %v618 = vld [vmem:[#allocation4 + $0x28] sm:$0xff]
    %v619 = vld [vmem:[#allocation4 + $0x30] sm:$0xff]
    %v620 = vld [vmem:[#allocation4 + $0x38] sm:$0xff]
    %v621 = vld [vmem:[#allocation4 + $0x40] sm:$0xff]
    %v622 = vld [vmem:[#allocation4 + $0x48] sm:$0xff]
    %v623 = vld [vmem:[#allocation4 + $0x50] sm:$0xff]
    %v624 = vld [vmem:[#allocation4 + $0x58] sm:$0xff]
    %v625 = vld [vmem:[#allocation4 + $0x60] sm:$0xff]
    %v626 = vld [vmem:[#allocation4 + $0x68] sm:$0xff]
    %v627 = vld [vmem:[#allocation4 + $0x70] sm:$0xff]
    %v628 = vld [vmem:[#allocation4 + $0x78] sm:$0xff]
    %v645 = vunpack.c.l.b16 %v613
    %v646 = vunpack.c.h.b16 %v613
    %v647 = vunpack.c.l.b16 %v614
    %v648 = vunpack.c.h.b16 %v614
    %v649 = vunpack.c.l.b16 %v615
    %v650 = vunpack.c.h.b16 %v615
    %v651 = vunpack.c.l.b16 %v616
    %v652 = vunpack.c.h.b16 %v616
    %v653 = vunpack.c.l.b16 %v617
    %v654 = vunpack.c.h.b16 %v617
    %v655 = vunpack.c.l.b16 %v618
    %v656 = vunpack.c.h.b16 %v618
    %v657 = vunpack.c.l.b16 %v619
    %v658 = vunpack.c.h.b16 %v619
    %v659 = vunpack.c.l.b16 %v620
    %v660 = vunpack.c.h.b16 %v620
    %v661 = vunpack.c.l.b16 %v621
    %v662 = vunpack.c.h.b16 %v621
    %v663 = vunpack.c.l.b16 %v622
    %v664 = vunpack.c.h.b16 %v622
    %v665 = vunpack.c.l.b16 %v623
    %v666 = vunpack.c.h.b16 %v623
    %v667 = vunpack.c.l.b16 %v624
    %v668 = vunpack.c.h.b16 %v624
    %v669 = vunpack.c.l.b16 %v625
    %v670 = vunpack.c.h.b16 %v625
    %v671 = vunpack.c.l.b16 %v626
    %v672 = vunpack.c.h.b16 %v626
    %v673 = vunpack.c.l.b16 %v627
    %v674 = vunpack.c.h.b16 %v627
    %v675 = vunpack.c.l.b16 %v628
    %v676 = vunpack.c.h.b16 %v628
    %v677 = vpack.c.b16 %v647, %v645
    %v678 = vpack.c.b16 %v648, %v646
    %v679 = vpack.c.b16 %v651, %v649
    %v680 = vpack.c.b16 %v652, %v650
    %v681 = vpack.c.b16 %v655, %v653
    %v682 = vpack.c.b16 %v656, %v654
    %v683 = vpack.c.b16 %v659, %v657
    %v684 = vpack.c.b16 %v660, %v658
    %v685 = vpack.c.b16 %v663, %v661
    %v686 = vpack.c.b16 %v664, %v662
    %v687 = vpack.c.b16 %v667, %v665
    %v688 = vpack.c.b16 %v668, %v666
    %v689 = vpack.c.b16 %v671, %v669
    %v690 = vpack.c.b16 %v672, %v670
    %v691 = vpack.c.b16 %v675, %v673
    %v692 = vpack.c.b16 %v676, %v674
    %709 = vmatprep.subr.bf16.mxu0 %v678
    %710 = vmatpush1.bf16.msra.mxu0 %v677
    %711 = vmatprep.subr.bf16.mxu0 %v680
    %712 = vmatpush1.bf16.msra.mxu0 %v679
    %713 = vmatprep.subr.bf16.mxu0 %v682
    %714 = vmatpush1.bf16.msra.mxu0 %v681
    %715 = vmatprep.subr.bf16.mxu0 %v684
    %716 = vmatpush1.bf16.msra.mxu0 %v683
    %717 = vmatprep.subr.bf16.mxu0 %v686
    %718 = vmatpush1.bf16.msra.mxu0 %v685
    %719 = vmatprep.subr.bf16.mxu0 %v688
    %720 = vmatpush1.bf16.msra.mxu0 %v687
    %721 = vmatprep.subr.bf16.mxu0 %v690
    %722 = vmatpush1.bf16.msra.mxu0 %v689
    %723 = vmatprep.subr.bf16.mxu0 %v692
    %724 = vmatpush1.bf16.msra.mxu0 %v691
    %725 = vmatprep.subr.bf16.mxu0 0
    %726 = vmatpush1.bf16.msra.mxu0 0
    %727 = vmatprep.subr.bf16.mxu0 0
    %728 = vmatpush1.bf16.msra.mxu0 0
    %729 = vmatprep.subr.bf16.mxu0 0
    %730 = vmatpush1.bf16.msra.mxu0 0
    %731 = vmatprep.subr.bf16.mxu0 0
    %732 = vmatpush1.bf16.msra.mxu0 0
    %733 = vmatprep.subr.bf16.mxu0 0
    %734 = vmatpush1.bf16.msra.mxu0 0
    %735 = vmatprep.subr.bf16.mxu0 0
    %736 = vmatpush1.bf16.msra.mxu0 0
    %737 = vmatprep.subr.bf16.mxu0 0
    %738 = vmatpush1.bf16.msra.mxu0 0
    %739 = vmatprep.subr.bf16.mxu0 0
    %740 = vmatpush1.bf16.msra.mxu0 0
    %741 = vmatprep.mubr.bf16.mxu0 0
    %742 = vmatmul.mubr.bf16.gmra.mrb[0].mxu0 %v612
    %v743 = vpop.f32.mrb[0].mxu0
    %v744 = vadd.f32 0.0, %v743
    %v745 = vpop.f32.mrb[0].mxu0
    %v746 = vadd.f32 0.0, %v745
    %v747 = vpop.f32.mrb[0].mxu0
    %v748 = vpop.f32.mrb[0].mxu0
    %749 = vdwg.mxu0
    %v750 = vld [vmem:[%s3 + $0xa] sm:$0x1]
    %v751 = vlaneseq
    %v752 = vshrl.u32 %v751, 7
    %v753 = vsub.s32 0, %v752
    %v754 = vrot.slane %v750, %v753
    %v755 = vadd.f32 %v744, %v754
    %756 = vst [vmem:[%s4] sm:$0xff] %v755
    %v757 = vld [vmem:[%s3 + $0xb] sm:$0x1]
    %v758 = vlaneseq
    %v759 = vshrl.u32 %v758, 7
    %v760 = vsub.s32 0, %v759
    %v761 = vrot.slane %v757, %v760
    %v762 = vadd.f32 %v746, %v761
    %v763 = vmul.f32 %v762, 0.01
    %v764 = vmax.f32 %v762, %v763
    %v765 = vadd.f32 %v611, %v764
    %v766 = vadd.f32 %v765, %v157
    %v767 = vpack.c.bf16 %v766, %v766
    %s768 = scalar_lea.vmem [#allocation2], 320
    %v769 = vld [vmem:[%s768] sm:$0xf]
    %v770 = vld [vmem:[%s768 + $0x4] sm:$0xf]
    %v771 = vld [vmem:[%s768 + $0x8] sm:$0xf]
    %v772 = vld [vmem:[%s768 + $0xc] sm:$0xf]
    %v773 = vld [vmem:[%s768 + $0x10] sm:$0xf]
    %v774 = vld [vmem:[%s768 + $0x14] sm:$0xf]
    %v775 = vld [vmem:[%s768 + $0x18] sm:$0xf]
    %v776 = vld [vmem:[%s768 + $0x1c] sm:$0xf]
    %v777 = vld [vmem:[%s768 + $0x20] sm:$0xf]
    %v778 = vld [vmem:[%s768 + $0x24] sm:$0xf]
    %v779 = vld [vmem:[%s768 + $0x28] sm:$0xf]
    %v780 = vld [vmem:[%s768 + $0x2c] sm:$0xf]
    %v781 = vld [vmem:[%s768 + $0x30] sm:$0xf]
    %v782 = vld [vmem:[%s768 + $0x34] sm:$0xf]
    %v783 = vld [vmem:[%s768 + $0x38] sm:$0xf]
    %v784 = vld [vmem:[%s768 + $0x3c] sm:$0xf]
    %v785 = vld [vmem:[%s3 + $0x5] sm:$0x1]
    %v786 = vlaneseq
    %v787 = vshrl.u32 %v786, 7
    %v788 = vsub.s32 0, %v787
    %v789 = vrot.slane %v785, %v788
    %v806 = vunpack.c.l.b16 %v769
    %v807 = vunpack.c.l.b16 %v770
    %v808 = vunpack.c.l.b16 %v771
    %v809 = vunpack.c.l.b16 %v772
    %v810 = vunpack.c.l.b16 %v773
    %v811 = vunpack.c.l.b16 %v774
    %v812 = vunpack.c.l.b16 %v775
    %v813 = vunpack.c.l.b16 %v776
    %v814 = vunpack.c.l.b16 %v777
    %v815 = vunpack.c.l.b16 %v778
    %v816 = vunpack.c.l.b16 %v779
    %v817 = vunpack.c.l.b16 %v780
    %v818 = vunpack.c.l.b16 %v781
    %v819 = vunpack.c.l.b16 %v782
    %v820 = vunpack.c.l.b16 %v783
    %v821 = vunpack.c.l.b16 %v784
    %v822 = vpack.c.b16 %v807, %v806
    %v823 = vpack.c.b16 %v809, %v808
    %v824 = vpack.c.b16 %v811, %v810
    %v825 = vpack.c.b16 %v813, %v812
    %v826 = vpack.c.b16 %v815, %v814
    %v827 = vpack.c.b16 %v817, %v816
    %v828 = vpack.c.b16 %v819, %v818
    %v829 = vpack.c.b16 %v821, %v820
    %838 = vmatprep.subr.bf16.mxu0 0
    %839 = vmatpush1.bf16.msra.mxu0 %v822
    %840 = vmatprep.subr.bf16.mxu0 0
    %841 = vmatpush1.bf16.msra.mxu0 %v823
    %842 = vmatprep.subr.bf16.mxu0 0
    %843 = vmatpush1.bf16.msra.mxu0 %v824
    %844 = vmatprep.subr.bf16.mxu0 0
    %845 = vmatpush1.bf16.msra.mxu0 %v825
    %846 = vmatprep.subr.bf16.mxu0 0
    %847 = vmatpush1.bf16.msra.mxu0 %v826
    %848 = vmatprep.subr.bf16.mxu0 0
    %849 = vmatpush1.bf16.msra.mxu0 %v827
    %850 = vmatprep.subr.bf16.mxu0 0
    %851 = vmatpush1.bf16.msra.mxu0 %v828
    %852 = vmatprep.subr.bf16.mxu0 0
    %853 = vmatpush1.bf16.msra.mxu0 %v829
    %854 = vmatprep.subr.bf16.mxu0 0
    %855 = vmatpush1.bf16.msra.mxu0 0
    %856 = vmatprep.subr.bf16.mxu0 0
    %857 = vmatpush1.bf16.msra.mxu0 0
    %858 = vmatprep.subr.bf16.mxu0 0
    %859 = vmatpush1.bf16.msra.mxu0 0
    %860 = vmatprep.subr.bf16.mxu0 0
    %861 = vmatpush1.bf16.msra.mxu0 0
    %862 = vmatprep.subr.bf16.mxu0 0
    %863 = vmatpush1.bf16.msra.mxu0 0
    %864 = vmatprep.subr.bf16.mxu0 0
    %865 = vmatpush1.bf16.msra.mxu0 0
    %866 = vmatprep.subr.bf16.mxu0 0
    %867 = vmatpush1.bf16.msra.mxu0 0
    %868 = vmatprep.subr.bf16.mxu0 0
    %869 = vmatpush1.bf16.msra.mxu0 0
    %870 = vmatprep.mubr.bf16.mxu0 0
    %871 = vmatmul.mubr.bf16.gmra.mrb[0].mxu0 %v767
    %v872 = vpop.f32.mrb[0].mxu0
    %v873 = vadd.f32 %v789, %v872
    %v874 = vpop.f32.mrb[0].mxu0
    %v875 = vpop.f32.mrb[0].mxu0
    %v876 = vpop.f32.mrb[0].mxu0
    %877 = vdwg.mxu0
    %v878 = vmul.f32 %v873, 0.01
    %v879 = vmax.f32 %v873, %v878
    %v880 = vpack.c.bf16 %v879, %v879
    %s881 = scalar_lea.vmem [#allocation2], 384
    %v882 = vld [vmem:[%s881] sm:$0xf]
    %v883 = vld [vmem:[%s881 + $0x4] sm:$0xf]
    %v884 = vld [vmem:[%s881 + $0x8] sm:$0xf]
    %v885 = vld [vmem:[%s881 + $0xc] sm:$0xf]
    %v886 = vld [vmem:[%s881 + $0x10] sm:$0xf]
    %v887 = vld [vmem:[%s881 + $0x14] sm:$0xf]
    %v888 = vld [vmem:[%s881 + $0x18] sm:$0xf]
    %v889 = vld [vmem:[%s881 + $0x1c] sm:$0xf]
    %v890 = vld [vmem:[%s881 + $0x20] sm:$0xf]
    %v891 = vld [vmem:[%s881 + $0x24] sm:$0xf]
    %v892 = vld [vmem:[%s881 + $0x28] sm:$0xf]
    %v893 = vld [vmem:[%s881 + $0x2c] sm:$0xf]
    %v894 = vld [vmem:[%s881 + $0x30] sm:$0xf]
    %v895 = vld [vmem:[%s881 + $0x34] sm:$0xf]
    %v896 = vld [vmem:[%s881 + $0x38] sm:$0xf]
    %v897 = vld [vmem:[%s881 + $0x3c] sm:$0xf]
    %v898 = vld [vmem:[%s3 + $0x6] sm:$0x1]
    %v899 = vlaneseq
    %v900 = vshrl.u32 %v899, 7
    %v901 = vsub.s32 0, %v900
    %v902 = vrot.slane %v898, %v901
    %v919 = vunpack.c.l.b16 %v882
    %v920 = vunpack.c.l.b16 %v883
    %v921 = vunpack.c.l.b16 %v884
    %v922 = vunpack.c.l.b16 %v885
    %v923 = vunpack.c.l.b16 %v886
    %v924 = vunpack.c.l.b16 %v887
    %v925 = vunpack.c.l.b16 %v888
    %v926 = vunpack.c.l.b16 %v889
    %v927 = vunpack.c.l.b16 %v890
    %v928 = vunpack.c.l.b16 %v891
    %v929 = vunpack.c.l.b16 %v892
    %v930 = vunpack.c.l.b16 %v893
    %v931 = vunpack.c.l.b16 %v894
    %v932 = vunpack.c.l.b16 %v895
    %v933 = vunpack.c.l.b16 %v896
    %v934 = vunpack.c.l.b16 %v897
    %v935 = vpack.c.b16 %v920, %v919
    %v936 = vpack.c.b16 %v922, %v921
    %v937 = vpack.c.b16 %v924, %v923
    %v938 = vpack.c.b16 %v926, %v925
    %v939 = vpack.c.b16 %v928, %v927
    %v940 = vpack.c.b16 %v930, %v929
    %v941 = vpack.c.b16 %v932, %v931
    %v942 = vpack.c.b16 %v934, %v933
    %951 = vmatprep.subr.bf16.mxu0 0
    %952 = vmatpush1.bf16.msra.mxu0 %v935
    %953 = vmatprep.subr.bf16.mxu0 0
    %954 = vmatpush1.bf16.msra.mxu0 %v936
    %955 = vmatprep.subr.bf16.mxu0 0
    %956 = vmatpush1.bf16.msra.mxu0 %v937
    %957 = vmatprep.subr.bf16.mxu0 0
    %958 = vmatpush1.bf16.msra.mxu0 %v938
    %959 = vmatprep.subr.bf16.mxu0 0
    %960 = vmatpush1.bf16.msra.mxu0 %v939
    %961 = vmatprep.subr.bf16.mxu0 0
    %962 = vmatpush1.bf16.msra.mxu0 %v940
    %963 = vmatprep.subr.bf16.mxu0 0
    %964 = vmatpush1.bf16.msra.mxu0 %v941
    %965 = vmatprep.subr.bf16.mxu0 0
    %966 = vmatpush1.bf16.msra.mxu0 %v942
    %967 = vmatprep.subr.bf16.mxu0 0
    %968 = vmatpush1.bf16.msra.mxu0 0
    %969 = vmatprep.subr.bf16.mxu0 0
    %970 = vmatpush1.bf16.msra.mxu0 0
    %971 = vmatprep.subr.bf16.mxu0 0
    %972 = vmatpush1.bf16.msra.mxu0 0
    %973 = vmatprep.subr.bf16.mxu0 0
    %974 = vmatpush1.bf16.msra.mxu0 0
    %975 = vmatprep.subr.bf16.mxu0 0
    %976 = vmatpush1.bf16.msra.mxu0 0
    %977 = vmatprep.subr.bf16.mxu0 0
    %978 = vmatpush1.bf16.msra.mxu0 0
    %979 = vmatprep.subr.bf16.mxu0 0
    %980 = vmatpush1.bf16.msra.mxu0 0
    %981 = vmatprep.subr.bf16.mxu0 0
    %982 = vmatpush1.bf16.msra.mxu0 0
    %983 = vmatprep.mubr.bf16.mxu0 0
    %984 = vmatmul.mubr.bf16.gmra.mrb[0].mxu0 %v880
    %v985 = vpop.f32.mrb[0].mxu0
    %v986 = vadd.f32 %v902, %v985
    %v987 = vpop.f32.mrb[0].mxu0
    %v988 = vpop.f32.mrb[0].mxu0
    %v989 = vpop.f32.mrb[0].mxu0
    %990 = vdwg.mxu0
    %v991 = vmul.f32 %v986, 0.01
    %v992 = vmax.f32 %v986, %v991
    %v993 = vadd.f32 %v766, %v992
    %v994 = vpack.c.bf16 %v993, %v993
    %s995 = scalar_lea.vmem [#allocation2], 448
    %v996 = vld [vmem:[%s995] sm:$0xf]
    %v997 = vld [vmem:[%s995 + $0x4] sm:$0xf]
    %v998 = vld [vmem:[%s995 + $0x8] sm:$0xf]
    %v999 = vld [vmem:[%s995 + $0xc] sm:$0xf]
    %v1000 = vld [vmem:[%s995 + $0x10] sm:$0xf]
    %v1001 = vld [vmem:[%s995 + $0x14] sm:$0xf]
    %v1002 = vld [vmem:[%s995 + $0x18] sm:$0xf]
    %v1003 = vld [vmem:[%s995 + $0x1c] sm:$0xf]
    %v1004 = vld [vmem:[%s995 + $0x20] sm:$0xf]
    %v1005 = vld [vmem:[%s995 + $0x24] sm:$0xf]
    %v1006 = vld [vmem:[%s995 + $0x28] sm:$0xf]
    %v1007 = vld [vmem:[%s995 + $0x2c] sm:$0xf]
    %v1008 = vld [vmem:[%s995 + $0x30] sm:$0xf]
    %v1009 = vld [vmem:[%s995 + $0x34] sm:$0xf]
    %v1010 = vld [vmem:[%s995 + $0x38] sm:$0xf]
    %v1011 = vld [vmem:[%s995 + $0x3c] sm:$0xf]
    %v1012 = vld [vmem:[%s3 + $0x7] sm:$0x1]
    %v1013 = vlaneseq
    %v1014 = vshrl.u32 %v1013, 7
    %v1015 = vsub.s32 0, %v1014
    %v1016 = vrot.slane %v1012, %v1015
    %v1033 = vunpack.c.l.b16 %v996
    %v1034 = vunpack.c.l.b16 %v997
    %v1035 = vunpack.c.l.b16 %v998
    %v1036 = vunpack.c.l.b16 %v999
    %v1037 = vunpack.c.l.b16 %v1000
    %v1038 = vunpack.c.l.b16 %v1001
    %v1039 = vunpack.c.l.b16 %v1002
    %v1040 = vunpack.c.l.b16 %v1003
    %v1041 = vunpack.c.l.b16 %v1004
    %v1042 = vunpack.c.l.b16 %v1005
    %v1043 = vunpack.c.l.b16 %v1006
    %v1044 = vunpack.c.l.b16 %v1007
    %v1045 = vunpack.c.l.b16 %v1008
    %v1046 = vunpack.c.l.b16 %v1009
    %v1047 = vunpack.c.l.b16 %v1010
    %v1048 = vunpack.c.l.b16 %v1011
    %v1049 = vpack.c.b16 %v1034, %v1033
    %v1050 = vpack.c.b16 %v1036, %v1035
    %v1051 = vpack.c.b16 %v1038, %v1037
    %v1052 = vpack.c.b16 %v1040, %v1039
    %v1053 = vpack.c.b16 %v1042, %v1041
    %v1054 = vpack.c.b16 %v1044, %v1043
    %v1055 = vpack.c.b16 %v1046, %v1045
    %v1056 = vpack.c.b16 %v1048, %v1047
    %1065 = vmatprep.subr.bf16.mxu0 0
    %1066 = vmatpush1.bf16.msra.mxu0 %v1049
    %1067 = vmatprep.subr.bf16.mxu0 0
    %1068 = vmatpush1.bf16.msra.mxu0 %v1050
    %1069 = vmatprep.subr.bf16.mxu0 0
    %1070 = vmatpush1.bf16.msra.mxu0 %v1051
    %1071 = vmatprep.subr.bf16.mxu0 0
    %1072 = vmatpush1.bf16.msra.mxu0 %v1052
    %1073 = vmatprep.subr.bf16.mxu0 0
    %1074 = vmatpush1.bf16.msra.mxu0 %v1053
    %1075 = vmatprep.subr.bf16.mxu0 0
    %1076 = vmatpush1.bf16.msra.mxu0 %v1054
    %1077 = vmatprep.subr.bf16.mxu0 0
    %1078 = vmatpush1.bf16.msra.mxu0 %v1055
    %1079 = vmatprep.subr.bf16.mxu0 0
    %1080 = vmatpush1.bf16.msra.mxu0 %v1056
    %1081 = vmatprep.subr.bf16.mxu0 0
    %1082 = vmatpush1.bf16.msra.mxu0 0
    %1083 = vmatprep.subr.bf16.mxu0 0
    %1084 = vmatpush1.bf16.msra.mxu0 0
    %1085 = vmatprep.subr.bf16.mxu0 0
    %1086 = vmatpush1.bf16.msra.mxu0 0
    %1087 = vmatprep.subr.bf16.mxu0 0
    %1088 = vmatpush1.bf16.msra.mxu0 0
    %1089 = vmatprep.subr.bf16.mxu0 0
    %1090 = vmatpush1.bf16.msra.mxu0 0
    %1091 = vmatprep.subr.bf16.mxu0 0
    %1092 = vmatpush1.bf16.msra.mxu0 0
    %1093 = vmatprep.subr.bf16.mxu0 0
    %1094 = vmatpush1.bf16.msra.mxu0 0
    %1095 = vmatprep.subr.bf16.mxu0 0
    %1096 = vmatpush1.bf16.msra.mxu0 0
    %1097 = vmatprep.mubr.bf16.mxu0 0
    %1098 = vmatmul.mubr.bf16.gmra.mrb[0].mxu0 %v994
    %v1099 = vpop.f32.mrb[0].mxu0
    %v1100 = vadd.f32 %v1016, %v1099
    %v1101 = vpop.f32.mrb[0].mxu0
    %v1102 = vpop.f32.mrb[0].mxu0
    %v1103 = vpop.f32.mrb[0].mxu0
    %1104 = vdwg.mxu0
    %v1105 = vmul.f32 %v1100, 0.01
    %v1106 = vmax.f32 %v1100, %v1105
    %v1107 = vpack.c.bf16 %v1106, %v1106
    %s1108 = scalar_lea.vmem [#allocation2], 512
    %v1109 = vld [vmem:[%s1108] sm:$0xf]
    %v1110 = vld [vmem:[%s1108 + $0x4] sm:$0xf]
    %v1111 = vld [vmem:[%s1108 + $0x8] sm:$0xf]
    %v1112 = vld [vmem:[%s1108 + $0xc] sm:$0xf]
    %v1113 = vld [vmem:[%s1108 + $0x10] sm:$0xf]
    %v1114 = vld [vmem:[%s1108 + $0x14] sm:$0xf]
    %v1115 = vld [vmem:[%s1108 + $0x18] sm:$0xf]
    %v1116 = vld [vmem:[%s1108 + $0x1c] sm:$0xf]
    %v1117 = vld [vmem:[%s1108 + $0x20] sm:$0xf]
    %v1118 = vld [vmem:[%s1108 + $0x24] sm:$0xf]
    %v1119 = vld [vmem:[%s1108 + $0x28] sm:$0xf]
    %v1120 = vld [vmem:[%s1108 + $0x2c] sm:$0xf]
    %v1121 = vld [vmem:[%s1108 + $0x30] sm:$0xf]
    %v1122 = vld [vmem:[%s1108 + $0x34] sm:$0xf]
    %v1123 = vld [vmem:[%s1108 + $0x38] sm:$0xf]
    %v1124 = vld [vmem:[%s1108 + $0x3c] sm:$0xf]
    %v1125 = vld [vmem:[%s3 + $0x8] sm:$0x1]
    %v1126 = vlaneseq
    %v1127 = vshrl.u32 %v1126, 7
    %v1128 = vsub.s32 0, %v1127
    %v1129 = vrot.slane %v1125, %v1128
    %v1146 = vunpack.c.l.b16 %v1109
    %v1147 = vunpack.c.l.b16 %v1110
    %v1148 = vunpack.c.l.b16 %v1111
    %v1149 = vunpack.c.l.b16 %v1112
    %v1150 = vunpack.c.l.b16 %v1113
    %v1151 = vunpack.c.l.b16 %v1114
    %v1152 = vunpack.c.l.b16 %v1115
    %v1153 = vunpack.c.l.b16 %v1116
    %v1154 = vunpack.c.l.b16 %v1117
    %v1155 = vunpack.c.l.b16 %v1118
    %v1156 = vunpack.c.l.b16 %v1119
    %v1157 = vunpack.c.l.b16 %v1120
    %v1158 = vunpack.c.l.b16 %v1121
    %v1159 = vunpack.c.l.b16 %v1122
    %v1160 = vunpack.c.l.b16 %v1123
    %v1161 = vunpack.c.l.b16 %v1124
    %v1162 = vpack.c.b16 %v1147, %v1146
    %v1163 = vpack.c.b16 %v1149, %v1148
    %v1164 = vpack.c.b16 %v1151, %v1150
    %v1165 = vpack.c.b16 %v1153, %v1152
    %v1166 = vpack.c.b16 %v1155, %v1154
    %v1167 = vpack.c.b16 %v1157, %v1156
    %v1168 = vpack.c.b16 %v1159, %v1158
    %v1169 = vpack.c.b16 %v1161, %v1160
    %1178 = vmatprep.subr.bf16.mxu0 0
    %1179 = vmatpush1.bf16.msra.mxu0 %v1162
    %1180 = vmatprep.subr.bf16.mxu0 0
    %1181 = vmatpush1.bf16.msra.mxu0 %v1163
    %1182 = vmatprep.subr.bf16.mxu0 0
    %1183 = vmatpush1.bf16.msra.mxu0 %v1164
    %1184 = vmatprep.subr.bf16.mxu0 0
    %1185 = vmatpush1.bf16.msra.mxu0 %v1165
    %1186 = vmatprep.subr.bf16.mxu0 0
    %1187 = vmatpush1.bf16.msra.mxu0 %v1166
    %1188 = vmatprep.subr.bf16.mxu0 0
    %1189 = vmatpush1.bf16.msra.mxu0 %v1167
    %1190 = vmatprep.subr.bf16.mxu0 0
    %1191 = vmatpush1.bf16.msra.mxu0 %v1168
    %1192 = vmatprep.subr.bf16.mxu0 0
    %1193 = vmatpush1.bf16.msra.mxu0 %v1169
    %1194 = vmatprep.subr.bf16.mxu0 0
    %1195 = vmatpush1.bf16.msra.mxu0 0
    %1196 = vmatprep.subr.bf16.mxu0 0
    %1197 = vmatpush1.bf16.msra.mxu0 0
    %1198 = vmatprep.subr.bf16.mxu0 0
    %1199 = vmatpush1.bf16.msra.mxu0 0
    %1200 = vmatprep.subr.bf16.mxu0 0
    %1201 = vmatpush1.bf16.msra.mxu0 0
    %1202 = vmatprep.subr.bf16.mxu0 0
    %1203 = vmatpush1.bf16.msra.mxu0 0
    %1204 = vmatprep.subr.bf16.mxu0 0
    %1205 = vmatpush1.bf16.msra.mxu0 0
    %1206 = vmatprep.subr.bf16.mxu0 0
    %1207 = vmatpush1.bf16.msra.mxu0 0
    %1208 = vmatprep.subr.bf16.mxu0 0
    %1209 = vmatpush1.bf16.msra.mxu0 0
    %1210 = vmatprep.mubr.bf16.mxu0 0
    %1211 = vmatmul.mubr.bf16.gmra.mrb[0].mxu0 %v1107
    %v1212 = vpop.f32.mrb[0].mxu0
    %v1213 = vadd.f32 %v1129, %v1212
    %v1214 = vpop.f32.mrb[0].mxu0
    %v1215 = vpop.f32.mrb[0].mxu0
    %v1216 = vpop.f32.mrb[0].mxu0
    %1217 = vdwg.mxu0
    %v1218 = vmul.f32 %v1213, 0.01
    %v1219 = vmax.f32 %v1213, %v1218
    %v1220 = vadd.f32 %v993, %v1219
    %v1221 = vadd.f32 %v157, %v1220
    %v1222 = vpack.c.bf16 %v1221, %v1221
    %s1223 = scalar_lea.vmem [#allocation2], 576
    %v1224 = vld [vmem:[%s1223] sm:$0xf]
    %v1225 = vld [vmem:[%s1223 + $0x4] sm:$0xf]
    %v1226 = vld [vmem:[%s1223 + $0x8] sm:$0xf]
    %v1227 = vld [vmem:[%s1223 + $0xc] sm:$0xf]
    %v1228 = vld [vmem:[%s1223 + $0x10] sm:$0xf]
    %v1229 = vld [vmem:[%s1223 + $0x14] sm:$0xf]
    %v1230 = vld [vmem:[%s1223 + $0x18] sm:$0xf]
    %v1231 = vld [vmem:[%s1223 + $0x1c] sm:$0xf]
    %v1232 = vld [vmem:[%s1223 + $0x20] sm:$0xf]
    %v1233 = vld [vmem:[%s1223 + $0x24] sm:$0xf]
    %v1234 = vld [vmem:[%s1223 + $0x28] sm:$0xf]
    %v1235 = vld [vmem:[%s1223 + $0x2c] sm:$0xf]
    %v1236 = vld [vmem:[%s1223 + $0x30] sm:$0xf]
    %v1237 = vld [vmem:[%s1223 + $0x34] sm:$0xf]
    %v1238 = vld [vmem:[%s1223 + $0x38] sm:$0xf]
    %v1239 = vld [vmem:[%s1223 + $0x3c] sm:$0xf]
    %v1240 = vld [vmem:[%s3 + $0x9] sm:$0x1]
    %v1241 = vlaneseq
    %v1242 = vshrl.u32 %v1241, 7
    %v1243 = vsub.s32 0, %v1242
    %v1244 = vrot.slane %v1240, %v1243
    %v1261 = vunpack.c.l.b16 %v1224
    %v1262 = vunpack.c.l.b16 %v1225
    %v1263 = vunpack.c.l.b16 %v1226
    %v1264 = vunpack.c.l.b16 %v1227
    %v1265 = vunpack.c.l.b16 %v1228
    %v1266 = vunpack.c.l.b16 %v1229
    %v1267 = vunpack.c.l.b16 %v1230
    %v1268 = vunpack.c.l.b16 %v1231
    %v1269 = vunpack.c.l.b16 %v1232
    %v1270 = vunpack.c.l.b16 %v1233
    %v1271 = vunpack.c.l.b16 %v1234
    %v1272 = vunpack.c.l.b16 %v1235
    %v1273 = vunpack.c.l.b16 %v1236
    %v1274 = vunpack.c.l.b16 %v1237
    %v1275 = vunpack.c.l.b16 %v1238
    %v1276 = vunpack.c.l.b16 %v1239
    %v1277 = vpack.c.b16 %v1262, %v1261
    %v1278 = vpack.c.b16 %v1264, %v1263
    %v1279 = vpack.c.b16 %v1266, %v1265
    %v1280 = vpack.c.b16 %v1268, %v1267
    %v1281 = vpack.c.b16 %v1270, %v1269
    %v1282 = vpack.c.b16 %v1272, %v1271
    %v1283 = vpack.c.b16 %v1274, %v1273
    %v1284 = vpack.c.b16 %v1276, %v1275
    %1293 = vmatprep.subr.bf16.mxu0 0
    %1294 = vmatpush1.bf16.msra.mxu0 %v1277
    %1295 = vmatprep.subr.bf16.mxu0 0
    %1296 = vmatpush1.bf16.msra.mxu0 %v1278
    %1297 = vmatprep.subr.bf16.mxu0 0
    %1298 = vmatpush1.bf16.msra.mxu0 %v1279
    %1299 = vmatprep.subr.bf16.mxu0 0
    %1300 = vmatpush1.bf16.msra.mxu0 %v1280
    %1301 = vmatprep.subr.bf16.mxu0 0
    %1302 = vmatpush1.bf16.msra.mxu0 %v1281
    %1303 = vmatprep.subr.bf16.mxu0 0
    %1304 = vmatpush1.bf16.msra.mxu0 %v1282
    %1305 = vmatprep.subr.bf16.mxu0 0
    %1306 = vmatpush1.bf16.msra.mxu0 %v1283
    %1307 = vmatprep.subr.bf16.mxu0 0
    %1308 = vmatpush1.bf16.msra.mxu0 %v1284
    %1309 = vmatprep.subr.bf16.mxu0 0
    %1310 = vmatpush1.bf16.msra.mxu0 0
    %1311 = vmatprep.subr.bf16.mxu0 0
    %1312 = vmatpush1.bf16.msra.mxu0 0
    %1313 = vmatprep.subr.bf16.mxu0 0
    %1314 = vmatpush1.bf16.msra.mxu0 0
    %1315 = vmatprep.subr.bf16.mxu0 0
    %1316 = vmatpush1.bf16.msra.mxu0 0
    %1317 = vmatprep.subr.bf16.mxu0 0
    %1318 = vmatpush1.bf16.msra.mxu0 0
    %1319 = vmatprep.subr.bf16.mxu0 0
    %1320 = vmatpush1.bf16.msra.mxu0 0
    %1321 = vmatprep.subr.bf16.mxu0 0
    %1322 = vmatpush1.bf16.msra.mxu0 0
    %1323 = vmatprep.subr.bf16.mxu0 0
    %1324 = vmatpush1.bf16.msra.mxu0 0
    %1325 = vmatprep.mubr.bf16.mxu0 0
    %1326 = vmatmul.mubr.bf16.gmra.mrb[0].mxu0 %v1222
    %v1327 = vpop.f32.mrb[0].mxu0
    %v1328 = vadd.f32 %v1244, %v1327
    %v1329 = vpop.f32.mrb[0].mxu0
    %v1330 = vpop.f32.mrb[0].mxu0
    %v1331 = vpop.f32.mrb[0].mxu0
    %1332 = vdwg.mxu0
    %1333 = vst [vmem:[%s4 + $0x8] sm:$0xff] %v1328
    // Predicated region
    $region26: #{refine_net_forward.1} parent=1 // pred_check
      _
    $region27: #{refine_net_forward.1} parent=1 // pred_check_branch
      %1335 = sbr.rel (0) target = $region29
    $region28: #{refine_net_forward.1} parent=1 // pred_region
      _
    $region29: #{refine_net_forward.1} parent=1 // pred_fallthru
      _
    // Predicated region
    $region30: #{refine_net_forward.1} parent=1 // pred_check
      _
    $region31: #{refine_net_forward.1} parent=1 // pred_check_branch
      %1337 = sbr.rel (0) target = $region33
    $region32: #{refine_net_forward.1} parent=1 // pred_region
      _
    $region33: #{refine_net_forward.1} parent=1 // pred_fallthru
      _
    %1338 = vsyncpa [#allocation3], 1
    %1339 = vsyncpa [#allocation5], 1

</llo_original>
